<compile_context>
chip_gen: v6e
topology: v6e:2x2x1
jax: 0.10.0
libtpu: 0.0.40
codegen_flags: <defaults>
</compile_context>

<pallas_src>
import functools
import math

import jax
import jax.numpy as jnp
from jax import lax
from jax.experimental import pallas as pl
from jax.experimental.pallas import tpu as pltpu


def _round_up(x, m):
    return (x + m - 1) // m * m


def _cdiv(a, b):
    return (a + b - 1) // b


def _vmem_budget_bytes():
    """Per-generation VMEM budget (~102 MiB on 128 MiB parts, ~51 MiB on v7x)."""
    try:
        cap = int(pltpu.get_tpu_info().vmem_capacity_bytes)
    except Exception:
        cap = 64 << 20                      # assume the smallest part (v7x)
    return max(cap - max(cap // 5, 8 << 20), 32 << 20)


def _stft_kernel(xa_ref, xb_ref, basis_ref, out_ref, frames_ref, *, S, W, strip):
    """One (batch, frame-tile, freq-tile) grid step.

    xa_ref:     (1, TM, W)      hop-rows of the padded signal, row block j
    xb_ref:     (1, TM, W)      row block j+1 (spill-over rows for the last frames)
    basis_ref:  (2, n_fft, TK)  [w*cos ; -w*sin] windowed DFT basis (freq tile)
    out_ref:    (1, 2, TM, TK)  (magnitude, phase) planes
    frames_ref: (TM, n_fft)     VMEM scratch, frame matrix reused across freq tiles
    """
    # Build the frame matrix once per (batch, frame-tile); the innermost
    # ("arbitrary") frequency axis reuses it.
    @pl.when(pl.program_id(2) == 0)
    def _():
        xa = xa_ref[0]                                       # (TM, W)
        if S == 1:
            frames_ref[...] = xa
        else:
            xb = xb_ref[0]
            for s in range(S):
                if s == 0:
                    seg = xa
                else:
                    # rows [s, s+TM) of the (2*TM)-row window == frames' segment s
                    seg = jnp.concatenate([xa[s:, :], xb[:s, :]], axis=0)
                frames_ref[:, s * W:(s + 1) * W] = seg

    cos_b = basis_ref[0]                                     # (n_fft, TK)
    msin_b = basis_ref[1]
    tm = frames_ref.shape[0]
    # Strip sub-tiling: strip t+1's MXU matmuls overlap strip t's sqrt/arctan2
    # (VPU/EUP) epilogue, which dominates for small-to-medium n_fft.
    for t in range(tm // strip):
        rows = pl.ds(t * strip, strip)
        fr = frames_ref[rows, :]
        re = jnp.dot(fr, cos_b, precision=lax.Precision.HIGHEST,
                     preferred_element_type=jnp.float32)
        im = jnp.dot(fr, msin_b, precision=lax.Precision.HIGHEST,
                     preferred_element_type=jnp.float32)
        out_ref[0, 0, rows, :] = jnp.sqrt(re * re + im * im)
        out_ref[0, 1, rows, :] = jnp.arctan2(im, re)


def _plan_tiles(B, n_frames, n_fft, W, S, budget):
    """Choose (TM, STRIP, TK, Kp) under the per-generation VMEM budget."""
    f32 = 4
    K = n_fft // 2 + 1
    Kp = _round_up(K, 128)

    # Frequency tiling: keep the whole (single-buffered) basis resident if it
    # fits in half the budget; otherwise stream double-buffered column tiles.
    basis_full = 2 * n_fft * Kp * f32
    if basis_full <= budget // 2:
        TK = Kp
        basis_vmem = basis_full
    else:
        TK = ((budget // 2) // (2 * 2 * n_fft * f32)) // 128 * 128
        TK = int(max(128, min(TK, Kp)))
        Kp = _round_up(Kp, TK)
        basis_vmem = 2 * 2 * n_fft * TK * f32

    headroom = 2 << 20
    avail = budget - basis_vmem - headroom
    # Per frame-row bytes: xa+xb double-buffered, frames scratch (+ concat
    # temps), matmul result + mag/phase temporaries, double-buffered output.
    per_row = f32 * (2 * 2 * W + 2 * n_fft + 6 * TK + 2 * 2 * TK)
    TM = max(8, avail // per_row)
    TM = int(min(TM, 1024, _round_up(n_frames, 8)))
    # v7x megacore: keep >= 8 parallel grid steps when the problem allows it.
    while TM > 128 and B * _cdiv(n_frames, TM) < 8:
        TM //= 2
    if TM >= 128:
        TM = TM // 128 * 128
    else:
        TM = max(8, TM // 8 * 8)
    # The next-block spill-over (S-1 rows) must fit inside one block.
    TM = max(TM, _round_up(S, 8))
    strip = 128 if (TM >= 128 and TM % 128 == 0) else TM
    return TM, strip, TK, Kp


def stft_pallas(signal, n_fft, hop_length, win_length):
    """torch.stft(center=True, onesided=True) -> abs/angle -> stack(-1) -> unsqueeze(1)."""
    signal = signal.astype(jnp.float32)
    B, T = signal.shape

    # center=True: reflect-pad by n_fft//2 on each side (torch default pad_mode).
    pad = n_fft // 2
    x = jnp.pad(signal, ((0, 0), (pad, pad)), mode="reflect")
    Tp = x.shape[1]
    n_frames = 1 + (Tp - n_fft) // hop_length
    K = n_fft // 2 + 1

    # Periodic Hann window (torch.hann_window default), center-padded to n_fft.
    n = jnp.arange(win_length, dtype=jnp.float32)
    win = 0.5 - 0.5 * jnp.cos(2.0 * jnp.pi * n / win_length)
    lpad = (n_fft - win_length) // 2
    win_full = jnp.pad(win, (lpad, n_fft - win_length - lpad))

    # One-sided DFT basis with the window folded in: [0]=w*cos, [1]=-w*sin.
    # Angles from (n*k mod n_fft) in int32 -> exact phase (exact for n_fft<=32768).
    kk = jnp.arange(K, dtype=jnp.int32)
    nn = jnp.arange(n_fft, dtype=jnp.int32)
    nk_mod = (nn[:, None] * kk[None, :]) % n_fft
    ang = nk_mod.astype(jnp.float32) * jnp.float32(2.0 * math.pi / n_fft)
    cos_b = win_full[:, None] * jnp.cos(ang)                  # (n_fft, K)
    msin_b = -win_full[:, None] * jnp.sin(ang)                # (n_fft, K)

    # Fast path: hop | n_fft -> frames assembled in-kernel from hop-wide rows.
    fast = (n_fft % hop_length == 0) and (n_fft // hop_length <= 512)
    if fast:
        W, S = hop_length, n_fft // hop_length
    else:
        W, S = n_fft, 1

    budget = _vmem_budget_bytes()
    TM, STRIP, TK, Kp = _plan_tiles(B, n_frames, n_fft, W, S, budget)
    nj = _cdiv(n_frames, TM)
    nf = Kp // TK
    Fp = nj * TM
    Rtot = (nj + 1) * TM if fast else nj * TM   # +1 row block for xb spill-over

    basis = jnp.zeros((2, n_fft, Kp), jnp.float32)
    basis = basis.at[0, :, :K].set(cos_b)
    basis = basis.at[1, :, :K].set(msin_b)

    if fast:
        # Hop-rows of the padded signal: no overlapped-frame materialization.
        X = jnp.pad(x, ((0, 0), (0, Rtot * W - Tp))).reshape(B, Rtot, W)
        xb_index_map = lambda b, j, f: (b, j + 1, 0)
    else:
        # TODO(synk): hop does not divide n_fft; fall back to an XLA gather that
        # materializes overlapped frames (~n_fft/hop x input HBM traffic).
        starts = jnp.arange(n_frames) * hop_length
        idx = starts[:, None] + jnp.arange(n_fft)[None, :]
        frames = x[:, idx]                                    # (B, n_frames, n_fft)
        X = jnp.pad(frames, ((0, 0), (0, Rtot - n_frames), (0, 0)))
        xb_index_map = lambda b, j, f: (0, 0, 0)              # unused in-kernel

    if nf == 1:
        # Constant-index basis: a second pipeline buffer is pure VMEM waste.
        basis_spec = pl.BlockSpec((2, n_fft, TK), lambda b, j, f: (0, 0, f),
                                  pipeline_mode=pl.Buffered(1))
    else:
        basis_spec = pl.BlockSpec((2, n_fft, TK), lambda b, j, f: (0, 0, f))

    out_p = pl.pallas_call(
        functools.partial(_stft_kernel, S=S, W=W, strip=STRIP),
        out_shape=jax.ShapeDtypeStruct((B, 2, Fp, Kp), jnp.float32),
        grid=(B, nj, nf),
        in_specs=[
            pl.BlockSpec((1, TM, W), lambda b, j, f: (b, j, 0)),   # row block j
            pl.BlockSpec((1, TM, W), xb_index_map),                # row block j+1
            basis_spec,
        ],
        out_specs=pl.BlockSpec((1, 2, TM, TK), lambda b, j, f: (b, 0, j, f)),
        scratch_shapes=[pltpu.VMEM((TM, n_fft), jnp.float32)],
        compiler_params=pltpu.CompilerParams(
            dimension_semantics=("parallel", "parallel", "arbitrary"),
            vmem_limit_bytes=int(budget),
        ),
    )(X, X, basis)

    # Strip padding; reassemble the torch layout (B, 1, n_freq, n_frames, 2).
    # TODO(synk): downstream consumers that accept (B, 2, n_frames, K) could skip
    # this full-output transpose (one extra HBM read+write of the result).
    out = out_p[:, :, :n_frames, :K]                  # (B, 2, F, K)
    out = jnp.transpose(out, (0, 3, 2, 1))            # (B, K, F, 2)
    return out[:, None]                               # (B, 1, K, F, 2)


def _stft_reference(signal, n_fft, hop_length, win_length):
    """Pure-JAX reference (re, im) of shape (B, n_frames, K) for validation."""
    signal = signal.astype(jnp.float32)
    pad = n_fft // 2
    x = jnp.pad(signal, ((0, 0), (pad, pad)), mode="reflect")
    n_frames = 1 + (x.shape[1] - n_fft) // hop_length
    idx = (jnp.arange(n_frames) * hop_length)[:, None] + jnp.arange(n_fft)[None, :]
    fr = x[:, idx]                                            # (B, F, n_fft)
    nw = jnp.arange(win_length, dtype=jnp.float32)
    w = 0.5 - 0.5 * jnp.cos(2.0 * jnp.pi * nw / win_length)
    lp = (n_fft - win_length) // 2
    w = jnp.pad(w, (lp, n_fft - win_length - lp))
    K = n_fft // 2 + 1
    ang = (2.0 * jnp.pi / n_fft) * (jnp.arange(n_fft, dtype=jnp.float32)[:, None]
                                    * jnp.arange(K, dtype=jnp.float32)[None, :])
    fw = fr * w[None, None, :]
    re = jnp.einsum("bfn,nk->bfk", fw, jnp.cos(ang), precision=lax.Precision.HIGHEST)
    im = -jnp.einsum("bfn,nk->bfk", fw, jnp.sin(ang), precision=lax.Precision.HIGHEST)
    return re, im


if __name__ == "__main__":
    n_fft = 64
    hop_length = 16
    win_length = 64
    B, T = 2, 256

    key = jax.random.PRNGKey(0)
    signal = jax.random.normal(key, (B, T), dtype=jnp.float32)

    stft_fn = jax.jit(functools.partial(
        stft_pallas, n_fft=n_fft, hop_length=hop_length, win_length=win_length))
    out = stft_fn(signal)
    out = jax.block_until_ready(out)

    expected_frames = 1 + T // hop_length
    expected_freq = n_fft // 2 + 1
    assert out.shape == (B, 1, expected_freq, expected_frames, 2), out.shape
    assert out.dtype == jnp.float32
    assert bool(jnp.all(jnp.isfinite(out)))

    # Numerical check against a pure-JAX reference (compare re/im, which is
    # well-conditioned even where the magnitude is near zero).
    mag = out[:, 0, :, :, 0]                                  # (B, K, F)
    ph = out[:, 0, :, :, 1]
    re_k = jnp.transpose(mag * jnp.cos(ph), (0, 2, 1))        # (B, F, K)
    im_k = jnp.transpose(mag * jnp.sin(ph), (0, 2, 1))
    re_ref, im_ref = _stft_reference(signal, n_fft, hop_length, win_length)
    err = max(float(jnp.max(jnp.abs(re_k - re_ref))),
              float(jnp.max(jnp.abs(im_k - im_ref))))
    assert err < 5e-2, f"numerical mismatch vs reference: {err}"

    print("KERNEL_OK")
</pallas_src>

<mosaic_0001>
module attributes {stable_mosaic.version = 11 : i64} {
  func.func @_stft_kernel(%arg0: i32, %arg1: i32, %arg2: i32, %arg3: memref<1x24x16xf32, #tpu.memory_space<vmem>>, %arg4: memref<1x24x16xf32, #tpu.memory_space<vmem>>, %arg5: memref<2x64x128xf32, #tpu.memory_space<vmem>>, %arg6: memref<1x2x24x128xf32, #tpu.memory_space<vmem>>, %arg7: memref<24x64xf32, #tpu.memory_space<vmem>>) attributes {dimension_semantics = [#tpu.dimension_semantics<parallel>, #tpu.dimension_semantics<parallel>, #tpu.dimension_semantics<arbitrary>], iteration_bounds = array<i64: 2, 1, 1>, scalar_prefetch = 0 : i64, scratch_operands = 1 : i64, tpu.core_type = #tpu.core_type<tc>, window_params = [{transform_indices = @transform_0, window_bounds = array<i64: 1, 24, 16>}, {transform_indices = @transform_1, window_bounds = array<i64: 1, 24, 16>}, {pipeline_mode = #tpu.pipeline_mode<synchronous>, transform_indices = @transform_2, window_bounds = array<i64: 2, 64, 128>}, {transform_indices = @transform_3, window_bounds = array<i64: 1, 2, 24, 128>}]} {
    %c0_i32 = arith.constant 0 : i32
    %0 = arith.cmpi eq, %arg2, %c0_i32 : i32
    %1 = arith.extui %0 : i1 to i32
    %c0_i32_0 = arith.constant 0 : i32
    %2 = arith.cmpi ne, %1, %c0_i32_0 : i32
    scf.if %2 {
      %c0_16 = arith.constant 0 : index
      %c0_17 = arith.constant 0 : index
      %c0_18 = arith.constant 0 : index
      %21 = vector.load %arg3[%c0_16, %c0_17, %c0_18] : memref<1x24x16xf32, #tpu.memory_space<vmem>>, vector<1x24x16xf32>
      %22 = vector.shape_cast %21 : vector<1x24x16xf32> to vector<24x16xf32>
      %c0_19 = arith.constant 0 : index
      %c0_20 = arith.constant 0 : index
      %c0_21 = arith.constant 0 : index
      %23 = vector.load %arg4[%c0_19, %c0_20, %c0_21] : memref<1x24x16xf32, #tpu.memory_space<vmem>>, vector<1x24x16xf32>
      %24 = vector.shape_cast %23 : vector<1x24x16xf32> to vector<24x16xf32>
      %c0_22 = arith.constant 0 : index
      %c0_23 = arith.constant 0 : index
      %25 = vector.load %arg7[%c0_22, %c0_23] : memref<24x64xf32, #tpu.memory_space<vmem>>, vector<24x16xf32>
      tpu.vector_store %arg7[%c0_22, %c0_23], %22 {strides = array<i32>} : memref<24x64xf32, #tpu.memory_space<vmem>>, vector<24x16xf32>,
      %26 = vector.extract_strided_slice %22 {offsets = [1, 0], sizes = [23, 16], strides = [1, 1]} : vector<24x16xf32> to vector<23x16xf32>
      %27 = vector.extract_strided_slice %24 {offsets = [0, 0], sizes = [1, 16], strides = [1, 1]} : vector<24x16xf32> to vector<1x16xf32>
      %28 = tpu.concatenate %26, %27 in 0 : vector<23x16xf32>, vector<1x16xf32> -> vector<24x16xf32>
      %c0_24 = arith.constant 0 : index
      %c16 = arith.constant 16 : index
      %29 = vector.load %arg7[%c0_24, %c16] : memref<24x64xf32, #tpu.memory_space<vmem>>, vector<24x16xf32>
      tpu.vector_store %arg7[%c0_24, %c16], %28 {strides = array<i32>} : memref<24x64xf32, #tpu.memory_space<vmem>>, vector<24x16xf32>,
      %30 = vector.extract_strided_slice %22 {offsets = [2, 0], sizes = [22, 16], strides = [1, 1]} : vector<24x16xf32> to vector<22x16xf32>
      %31 = vector.extract_strided_slice %24 {offsets = [0, 0], sizes = [2, 16], strides = [1, 1]} : vector<24x16xf32> to vector<2x16xf32>
      %32 = tpu.concatenate %30, %31 in 0 : vector<22x16xf32>, vector<2x16xf32> -> vector<24x16xf32>
      %c0_25 = arith.constant 0 : index
      %c32 = arith.constant 32 : index
      %33 = vector.load %arg7[%c0_25, %c32] : memref<24x64xf32, #tpu.memory_space<vmem>>, vector<24x16xf32>
      tpu.vector_store %arg7[%c0_25, %c32], %32 {strides = array<i32>} : memref<24x64xf32, #tpu.memory_space<vmem>>, vector<24x16xf32>,
      %34 = vector.extract_strided_slice %22 {offsets = [3, 0], sizes = [21, 16], strides = [1, 1]} : vector<24x16xf32> to vector<21x16xf32>
      %35 = vector.extract_strided_slice %24 {offsets = [0, 0], sizes = [3, 16], strides = [1, 1]} : vector<24x16xf32> to vector<3x16xf32>
      %36 = tpu.concatenate %34, %35 in 0 : vector<21x16xf32>, vector<3x16xf32> -> vector<24x16xf32>
      %c0_26 = arith.constant 0 : index
      %c48 = arith.constant 48 : index
      %37 = vector.load %arg7[%c0_26, %c48] : memref<24x64xf32, #tpu.memory_space<vmem>>, vector<24x16xf32>
      tpu.vector_store %arg7[%c0_26, %c48], %36 {strides = array<i32>} : memref<24x64xf32, #tpu.memory_space<vmem>>, vector<24x16xf32>,
    } else {
    }
    %c0 = arith.constant 0 : index
    %c0_1 = arith.constant 0 : index
    %c0_2 = arith.constant 0 : index
    %3 = vector.load %arg5[%c0, %c0_1, %c0_2] : memref<2x64x128xf32, #tpu.memory_space<vmem>>, vector<1x64x128xf32>
    %4 = vector.shape_cast %3 : vector<1x64x128xf32> to vector<64x128xf32>
    %c1 = arith.constant 1 : index
    %c0_3 = arith.constant 0 : index
    %c0_4 = arith.constant 0 : index
    %5 = vector.load %arg5[%c1, %c0_3, %c0_4] : memref<2x64x128xf32, #tpu.memory_space<vmem>>, vector<1x64x128xf32>
    %6 = vector.shape_cast %5 : vector<1x64x128xf32> to vector<64x128xf32>
    %c0_5 = arith.constant 0 : index
    %c0_6 = arith.constant 0 : index
    %7 = vector.load %arg7[%c0_5, %c0_6] : memref<24x64xf32, #tpu.memory_space<vmem>>, vector<24x64xf32>
    %cst = arith.constant dense<0.000000e+00> : vector<24x128xf32>
    %8 = tpu.matmul %7, %4, %cst {dimension_numbers = #tpu.dot_dimension_numbers<[1], [0], [0], [1], [0, 0, 1, 1], [], []>, precision = #tpu.contract_precision<fp32>} : vector<24x64xf32>, vector<64x128xf32>, vector<24x128xf32> -> vector<24x128xf32>
    %cst_7 = arith.constant dense<0.000000e+00> : vector<24x128xf32>
    %9 = tpu.matmul %7, %6, %cst_7 {dimension_numbers = #tpu.dot_dimension_numbers<[1], [0], [0], [1], [0, 0, 1, 1], [], []>, precision = #tpu.contract_precision<fp32>} : vector<24x64xf32>, vector<64x128xf32>, vector<24x128xf32> -> vector<24x128xf32>
    %10 = arith.mulf %8, %8 : vector<24x128xf32>
    %11 = arith.mulf %9, %9 : vector<24x128xf32>
    %12 = arith.addf %10, %11 : vector<24x128xf32>
    %13 = math.sqrt %12 : vector<24x128xf32>
    %c0_8 = arith.constant 0 : index
    %c0_9 = arith.constant 0 : index
    %c0_10 = arith.constant 0 : index
    %c0_11 = arith.constant 0 : index
    %14 = vector.load %arg6[%c0_8, %c0_9, %c0_10, %c0_11] : memref<1x2x24x128xf32, #tpu.memory_space<vmem>>, vector<1x1x24x128xf32>
    %15 = vector.shape_cast %14 : vector<1x1x24x128xf32> to vector<24x128xf32>
    %16 = vector.shape_cast %13 : vector<24x128xf32> to vector<1x1x24x128xf32>
    tpu.vector_store %arg6[%c0_8, %c0_9, %c0_10, %c0_11], %16 {strides = array<i32>} : memref<1x2x24x128xf32, #tpu.memory_space<vmem>>, vector<1x1x24x128xf32>,
    %17 = math.atan2 %9, %8 : vector<24x128xf32>
    %c0_12 = arith.constant 0 : index
    %c1_13 = arith.constant 1 : index
    %c0_14 = arith.constant 0 : index
    %c0_15 = arith.constant 0 : index
    %18 = vector.load %arg6[%c0_12, %c1_13, %c0_14, %c0_15] : memref<1x2x24x128xf32, #tpu.memory_space<vmem>>, vector<1x1x24x128xf32>
    %19 = vector.shape_cast %18 : vector<1x1x24x128xf32> to vector<24x128xf32>
    %20 = vector.shape_cast %17 : vector<24x128xf32> to vector<1x1x24x128xf32>
    tpu.vector_store %arg6[%c0_12, %c1_13, %c0_14, %c0_15], %20 {strides = array<i32>} : memref<1x2x24x128xf32, #tpu.memory_space<vmem>>, vector<1x1x24x128xf32>,
    return
  }
  func.func @transform_0(%arg0: i32, %arg1: i32, %arg2: i32) -> (i32, i32, i32) {
    %c0_i32 = arith.constant 0 : i32
    %c0_i32_0 = arith.constant 0 : i32
    return %arg0, %arg1, %c0_i32 : i32, i32, i32
  }
  func.func @transform_1(%arg0: i32, %arg1: i32, %arg2: i32) -> (i32, i32, i32) {
    %c1_i32 = arith.constant 1 : i32
    %0 = arith.addi %arg1, %c1_i32 : i32
    %c0_i32 = arith.constant 0 : i32
    %c0_i32_0 = arith.constant 0 : i32
    return %arg0, %0, %c0_i32 : i32, i32, i32
  }
  func.func @transform_2(%arg0: i32, %arg1: i32, %arg2: i32) -> (i32, i32, i32) {
    %c0_i32 = arith.constant 0 : i32
    %c0_i32_0 = arith.constant 0 : i32
    %c0_i32_1 = arith.constant 0 : i32
    return %c0_i32, %c0_i32_0, %arg2 : i32, i32, i32
  }
  func.func @transform_3(%arg0: i32, %arg1: i32, %arg2: i32) -> (i32, i32, i32, i32) {
    %c0_i32 = arith.constant 0 : i32
    %c0_i32_0 = arith.constant 0 : i32
    return %arg0, %c0_i32, %arg1, %arg2 : i32, i32, i32, i32
  }
}

</mosaic_0001>

<llo_original>
// kernel: stft_pallas.1
$region0: #{stft_pallas.1}
  #allocation0 [shape = 'u32[]', space=smem, size = 0x4, offset = 0x4, fixed_abs, tag = 'smem constant byte address 0x4 - core index']
  #allocation1 [shape = 'u32[144,128]{1,0:T(1,128)}', space=vmem, size = 0x12000, scoped, tag = 'internal scratch']
  #allocation2 [shape = 'f32[24,64]{1,0:T(8,128)}', space=vmem, size = 0x3000, scoped, tag = 'scratch operand']
  %s0 = inlined_call_operand.vmem [shape: f32[2,48,16], index: 0, kind: input, shape index: {}, may-alias: {0,1}]
  %s1 = inlined_call_operand.vmem [shape: f32[2,48,16], index: 1, kind: input, shape index: {}, may-alias: {0,1}]
  %s2 = inlined_call_operand.vmem [shape: f32[2,64,128], index: 2, kind: input, shape index: {}]
  %s3 = inlined_call_operand.vmem [shape: f32[2,2,24,128], index: 3, kind: output, shape index: {}]
  %s4 = sld [smem:[#allocation0]]
  $region49: #{stft_pallas.1} parent=0
    _
  %s6 = ssub.s32 1, %s4
  %s7 = scalar_select 0, %s6, %s4
  loop: start=0, step=1, limit=4
  $region2: #{stft_pallas.1} parent=0 // loop_pre_header
    _
  $region3: #{stft_pallas.1} parent=0 // loop_header
    %s9 = sphi 0, %s13
    %p10 = scmp.ge.s32.totalorder %s9, 4
    %s16 = sphi 0, %s35
    %s17 = sphi 0, %s31
    %s18 = sphi 0, %s27
    %s19 = sphi 0, %s16
    %s20 = sphi 0, %s17
    %s21 = sphi 0, %s18
    %s22 = sphi 0, %s19
    %s23 = sphi 0, %s20
    %s24 = sphi 0, %s21
    %s40 = sphi 0, %s42
    %s43 = sphi 0, %s40
    %s44 = sphi 0, %s43
    %s60 = sphi 0, %s44
    %s70 = sphi 0, %s72
    %s73 = sphi 0, %s70
    %s74 = sphi 0, %s73
    %s90 = sphi 0, %s74
    %s96 = sphi 0, %s98
    %s99 = sphi 0, %s96
    %s100 = sphi 0, %s99
    %s116 = sphi 0, %s100
    %s126 = sphi 0, %s128
    %s129 = sphi 0, %s126
    %s130 = sphi 0, %s129
    %s146 = sphi 0, %s130
  $region4: #{stft_pallas.1} parent=0 // loop_header_branch
    %12 = sbr.rel (%p10) target = $region8
  $region5: #{stft_pallas.1} parent=0 // loop_body
    %s14 = ssub.s32 %s9, 1
    %s15 = ssub.s32 %s9, 2
    %s25 = sadd.s32 1, %s18
    %p26 = scmp.ge.s32.totalorder %s25, 1
    %s27 = scalar_select %p26, 0, %s25
    %s28 = sadd.s32 1, %s17
    %s29 = scalar_select %p26, %s28, %s17
    %p30 = scmp.ge.s32.totalorder %s29, 1
    %s31 = scalar_select %p30, 0, %s29
    %s32 = sadd.s32 1, %s16
    %s33 = scalar_select %p30, %s32, %s16
    %p34 = scmp.ge.s32.totalorder %s33, 2
    %s35 = scalar_select %p34, 0, %s33
    %s36 = ssub.s32 %s16, %s35
    %s37 = ssub.s32 %s17, %s31
    %s38 = sor.u32 %s36, %s37
    %p39 = scmp.eq.s32.totalorder %s38, 0
    %s41 = sadd.s32 %s40, 1
    %s42 = scalar_select %p39, %s40, %s41
    %p45 = pneg %p39
    %p46 = scmp.eq.s32.totalorder %s9, 1
    %p47 = por %p45, %p46
    %p48 = scmp.ne.s32.totalorder %s40, %s43
    %p49 = scmp.eq.s32.totalorder %s9, 0
    %p50 = por %p48, %p49
    %p51 = scmp.ne.s32.totalorder %s40, %s43
    %p52 = scmp.eq.s32.totalorder %s14, 1
    %p53 = por %p51, %p52
    %p54 = scmp.ne.s32.totalorder %s43, %s44
    %p55 = scmp.eq.s32.totalorder %s14, 0
    %p56 = por %p54, %p55
    %p57 = scmp.ne.s32.totalorder %s43, %s44
    %p58 = scmp.eq.s32.totalorder %s15, 1
    %p59 = por %p57, %p58
    %p61 = scmp.ne.s32.totalorder %s44, %s60
    %p62 = scmp.eq.s32.totalorder %s15, 0
    %p63 = por %p61, %p62
    %s64 = sadd.s32 %s17, 1
    %s65 = sadd.s32 %s31, 1
    %s66 = ssub.s32 %s16, %s35
    %s67 = ssub.s32 %s64, %s65
    %s68 = sor.u32 %s66, %s67
    %p69 = scmp.eq.s32.totalorder %s68, 0
    %s71 = sadd.s32 %s70, 1
    %s72 = scalar_select %p69, %s70, %s71
    %p75 = pneg %p69
    %p76 = scmp.eq.s32.totalorder %s9, 1
    %p77 = por %p75, %p76
    %p78 = scmp.ne.s32.totalorder %s70, %s73
    %p79 = scmp.eq.s32.totalorder %s9, 0
    %p80 = por %p78, %p79
    %p81 = scmp.ne.s32.totalorder %s70, %s73
    %p82 = scmp.eq.s32.totalorder %s14, 1
    %p83 = por %p81, %p82
    %p84 = scmp.ne.s32.totalorder %s73, %s74
    %p85 = scmp.eq.s32.totalorder %s14, 0
    %p86 = por %p84, %p85
    %p87 = scmp.ne.s32.totalorder %s73, %s74
    %p88 = scmp.eq.s32.totalorder %s15, 1
    %p89 = por %p87, %p88
    %p91 = scmp.ne.s32.totalorder %s74, %s90
    %p92 = scmp.eq.s32.totalorder %s15, 0
    %p93 = por %p91, %p92
    %s94 = ssub.s32 %s18, %s27
    %p95 = scmp.eq.s32.totalorder %s94, 0
    %s97 = sadd.s32 %s96, 1
    %s98 = scalar_select %p95, %s96, %s97
    %p101 = pneg %p95
    %p102 = scmp.eq.s32.totalorder %s9, 1
    %p103 = por %p101, %p102
    %p104 = scmp.ne.s32.totalorder %s96, %s99
    %p105 = scmp.eq.s32.totalorder %s9, 0
    %p106 = por %p104, %p105
    %p107 = scmp.ne.s32.totalorder %s96, %s99
    %p108 = scmp.eq.s32.totalorder %s14, 1
    %p109 = por %p107, %p108
    %p110 = scmp.ne.s32.totalorder %s99, %s100
    %p111 = scmp.eq.s32.totalorder %s14, 0
    %p112 = por %p110, %p111
    %p113 = scmp.ne.s32.totalorder %s99, %s100
    %p114 = scmp.eq.s32.totalorder %s15, 1
    %p115 = por %p113, %p114
    %p117 = scmp.ne.s32.totalorder %s100, %s116
    %p118 = scmp.eq.s32.totalorder %s15, 0
    %p119 = por %p117, %p118
    %s120 = ssub.s32 %s16, %s35
    %s121 = ssub.s32 %s17, %s31
    %s122 = sor.u32 %s120, %s121
    %s123 = ssub.s32 %s18, %s27
    %s124 = sor.u32 %s122, %s123
    %p125 = scmp.eq.s32.totalorder %s124, 0
    %s127 = sadd.s32 %s126, 1
    %s128 = scalar_select %p125, %s126, %s127
    %p131 = pneg %p125
    %p132 = scmp.eq.s32.totalorder %s9, 1
    %p133 = por %p131, %p132
    %p134 = scmp.ne.s32.totalorder %s126, %s129
    %p135 = scmp.eq.s32.totalorder %s9, 0
    %p136 = por %p134, %p135
    %p137 = scmp.ne.s32.totalorder %s126, %s129
    %p138 = scmp.eq.s32.totalorder %s14, 1
    %p139 = por %p137, %p138
    %p140 = scmp.ne.s32.totalorder %s129, %s130
    %p141 = scmp.eq.s32.totalorder %s14, 0
    %p142 = por %p140, %p141
    %p143 = scmp.ne.s32.totalorder %s129, %s130
    %p144 = scmp.eq.s32.totalorder %s15, 1
    %p145 = por %p143, %p144
    %p147 = scmp.ne.s32.totalorder %s130, %s146
    %p148 = scmp.eq.s32.totalorder %s15, 0
    %p149 = por %p147, %p148
    %p150 = scmp.le.s32.totalorder 1, %s9
    %p151 = scmp.lt.s32.totalorder %s9, 3
    %p152 = pnand %p150, %p151
    %p153 = pneg %p152
    // Predicated region
    $region9: #{stft_pallas.1} parent=5 // pred_check
      _
    $region10: #{stft_pallas.1} parent=5 // pred_check_branch
      %155 = sbr.rel (%p152) target = $region12
    $region11: #{stft_pallas.1} parent=5 // pred_region
      %s156 = ssub.s32 %s9, 1
      // Predicated region
      $region13: #{stft_pallas.1} parent=11 // pred_check
        %p157 = pneg %p112
      $region14: #{stft_pallas.1} parent=11 // pred_check_branch
        %159 = sbr.rel (%p157) target = $region16
      $region15: #{stft_pallas.1} parent=11 // pred_region
        %p160 = scmp.lt.s32.totalorder %s21, 0
        %s161 = scalar_select %p160, %s21, 0
        %s162 = smul.addr %s161, 8
        %s163 = scalar_lea.vmem %s2, %s162
      $region16: #{stft_pallas.1} parent=11 // pred_fallthru
        _
    $region12: #{stft_pallas.1} parent=5 // pred_fallthru
      _
    %p164 = scmp.lt.s32.totalorder %s9, 2
    // Predicated region
    $region17: #{stft_pallas.1} parent=5 // pred_check
      %p165 = pneg %p164
    $region18: #{stft_pallas.1} parent=5 // pred_check_branch
      %167 = sbr.rel (%p165) target = $region20
    $region19: #{stft_pallas.1} parent=5 // pred_region
      // Predicated region
      $region21: #{stft_pallas.1} parent=19 // pred_check
        %p168 = pneg %p50
      $region22: #{stft_pallas.1} parent=19 // pred_check_branch
        %170 = sbr.rel (%p168) target = $region24
      $region23: #{stft_pallas.1} parent=19 // pred_region
        %s171 = smul.u32 3, %s17
        %p172 = scmp.lt.s32.totalorder %s16, 1
        %s173 = scalar_select %p172, %s16, 1
        %p174 = scmp.lt.s32.totalorder %s171, 5
        %s175 = scalar_select %p174, %s171, 5
        %s176 = smul.addr %s173, 6
        %s177 = sadd.s32 %s175, %s176
        %s178 = smul.addr %s177, 8
        %s179 = scalar_lea.vmem %s0, %s178
        %s180 = smul.u32 3, %s17
      $region24: #{stft_pallas.1} parent=19 // pred_fallthru
        _
      // Predicated region
      $region25: #{stft_pallas.1} parent=19 // pred_check
        %p181 = pneg %p80
      $region26: #{stft_pallas.1} parent=19 // pred_check_branch
        %183 = sbr.rel (%p181) target = $region28
      $region27: #{stft_pallas.1} parent=19 // pred_region
        %s184 = sadd.s32 %s17, 1
        %s185 = smul.u32 3, %s184
        %p186 = scmp.lt.s32.totalorder %s16, 1
        %s187 = scalar_select %p186, %s16, 1
        %p188 = scmp.lt.s32.totalorder %s185, 5
        %s189 = scalar_select %p188, %s185, 5
        %s190 = smul.addr %s187, 6
        %s191 = sadd.s32 %s189, %s190
        %s192 = smul.addr %s191, 8
        %s193 = scalar_lea.vmem %s1, %s192
        %s194 = sadd.s32 %s17, 1
        %s195 = smul.u32 3, %s194
      $region28: #{stft_pallas.1} parent=19 // pred_fallthru
        _
    $region20: #{stft_pallas.1} parent=5 // pred_fallthru
      _
    %p196 = scmp.le.s32.totalorder 1, %s9
    %p197 = scmp.lt.s32.totalorder %s9, 3
    %p198 = pnand %p196, %p197
    %p199 = pneg %p198
    // Predicated region
    $region29: #{stft_pallas.1} parent=5 // pred_check
      _
    $region30: #{stft_pallas.1} parent=5 // pred_check_branch
      %201 = sbr.rel (%p198) target = $region32
    $region31: #{stft_pallas.1} parent=5 // pred_region
      %s202 = ssub.s32 %s9, 1
      %s203 = smul.u32 3, %s20
      %p204 = scmp.lt.s32.totalorder %s19, 1
      %s205 = scalar_select %p204, %s19, 1
      %p206 = scmp.lt.s32.totalorder %s203, 5
      %s207 = scalar_select %p206, %s203, 5
      %s208 = smul.addr %s205, 6
      %s209 = sadd.s32 %s207, %s208
      %s210 = smul.addr %s209, 8
      %s211 = scalar_lea.vmem %s0, %s210
      %p212 = pneg %p56
      %p213 = pneg %p53
      %s214 = sadd.s32 %s20, 1
      %s215 = smul.u32 3, %s214
      %p216 = scmp.lt.s32.totalorder %s19, 1
      %s217 = scalar_select %p216, %s19, 1
      %p218 = scmp.lt.s32.totalorder %s215, 5
      %s219 = scalar_select %p218, %s215, 5
      %s220 = smul.addr %s217, 6
      %s221 = sadd.s32 %s219, %s220
      %s222 = smul.addr %s221, 8
      %s223 = scalar_lea.vmem %s1, %s222
      %p224 = pneg %p86
      %p225 = pneg %p83
      %p226 = scmp.lt.s32.totalorder %s21, 0
      %s227 = scalar_select %p226, %s21, 0
      %s228 = smul.addr %s227, 8
      %s229 = scalar_lea.vmem %s2, %s228
      %p230 = pneg %p112
      %p231 = pneg %p109
      %p232 = pneg %p142
      %p233 = pneg %p139
      %s234 = smul.u32 3, %s20
      %p235 = scmp.lt.s32.totalorder %s19, 1
      %s236 = scalar_select %p235, %s19, 1
      %p237 = scmp.lt.s32.totalorder %s234, 2
      %s238 = scalar_select %p237, %s234, 2
      %p239 = scmp.lt.s32.totalorder %s21, 0
      %s240 = scalar_select %p239, %s21, 0
      %s241 = sadd.s32 %s240, %s238
      %s242 = smul.addr %s236, 6
      %s243 = sadd.s32 %s241, %s242
      %s244 = smul.addr %s243, 8
      %s245 = scalar_lea.vmem %s3, %s244
      %s246 = smul.u32 3, %s20
      %p247 = scmp.lt.s32.totalorder %s19, 1
      %s248 = scalar_select %p247, %s19, 1
      %p249 = scmp.lt.s32.totalorder %s246, 5
      %s250 = scalar_select %p249, %s246, 5
      %s251 = smul.addr %s248, 6
      %s252 = sadd.s32 %s250, %s251
      %s253 = smul.addr %s252, 8
      %s254 = scalar_lea.vmem %s0, %s253
      %s255 = smul.u32 3, %s20
      %s256 = sadd.s32 %s20, 1
      %s257 = smul.u32 3, %s256
      %p258 = scmp.lt.s32.totalorder %s19, 1
      %s259 = scalar_select %p258, %s19, 1
      %p260 = scmp.lt.s32.totalorder %s257, 5
      %s261 = scalar_select %p260, %s257, 5
      %s262 = smul.addr %s259, 6
      %s263 = sadd.s32 %s261, %s262
      %s264 = smul.addr %s263, 8
      %s265 = scalar_lea.vmem %s1, %s264
      %s266 = sadd.s32 %s20, 1
      %s267 = smul.u32 3, %s266
      %p268 = scmp.lt.s32.totalorder %s21, 0
      %s269 = scalar_select %p268, %s21, 0
      %s270 = smul.addr %s269, 8
      %s271 = scalar_lea.vmem %s2, %s270
      %s272 = smul.u32 3, %s20
      %p273 = scmp.lt.s32.totalorder %s19, 1
      %s274 = scalar_select %p273, %s19, 1
      %p275 = scmp.lt.s32.totalorder %s272, 2
      %s276 = scalar_select %p275, %s272, 2
      %p277 = scmp.lt.s32.totalorder %s21, 0
      %s278 = scalar_select %p277, %s21, 0
      %s279 = sadd.s32 %s278, %s276
      %s280 = smul.addr %s274, 6
      %s281 = sadd.s32 %s279, %s280
      %s282 = smul.addr %s281, 8
      %s283 = scalar_lea.vmem %s3, %s282
      %s284 = smul.u32 3, %s20
      %p285 = scmp.eq.s32.totalorder %s21, 0
      // Predicated region
      $region33: #{stft_pallas.1} parent=31 // pred_check
        %p286 = pneg %p285
      $region34: #{stft_pallas.1} parent=31 // pred_check_branch
        %288 = sbr.rel (%p286) target = $region36
      $region35: #{stft_pallas.1} parent=31 // pred_region
        %v289 = vld [vmem:[%s254] sm:$0xff]
        %v290 = vld [vmem:[%s254 + $0x8] sm:$0xff]
        %v291 = vld [vmem:[%s254 + $0x10] sm:$0xff]
        %v292 = vld [vmem:[%s265] sm:$0xff]
        %vm293 = vcmask 130048
        %294 = vst.msk [vmem:[#allocation2] sm:$0xff] %vm293, %v289
        %295 = vst.msk [vmem:[#allocation2 + $0x8] sm:$0xff] %vm293, %v290
        %296 = vst.msk [vmem:[#allocation2 + $0x10] sm:$0xff] %vm293, %v291
        %vm300 = vcmask 1046528
        %v301 = vrot.slane %v289, 1
        %v302 = vrot.slane %v290, 1
        %v303 = vsel %vm300, %v301, %v302
        %v304 = vrot.slane %v291, 1
        %v305 = vsel %vm300, %v302, %v304
        %v308 = vrot.slane %v292, 1
        %v310 = vsel %vm300, %v304, %v308
        %312 = vrot.lane.b32.xlu0 %v303, 16
        %v313 = vpop.permute.xlu0 %312
        %314 = vrot.lane.b32.xlu0 %v305, 16
        %v315 = vpop.permute.xlu0 %314
        %316 = vrot.lane.b32.xlu0 %v310, 16
        %v317 = vpop.permute.xlu0 %316
        %vm321 = vcmask 261248
        %322 = vst.msk [vmem:[#allocation2] sm:$0xff] %vm321, %v313
        %323 = vst.msk [vmem:[#allocation2 + $0x8] sm:$0xff] %vm321, %v315
        %324 = vst.msk [vmem:[#allocation2 + $0x10] sm:$0xff] %vm321, %v317
        %vm325 = vcmask 1045504
        %v326 = vrot.slane %v289, 2
        %v327 = vrot.slane %v290, 2
        %v328 = vsel %vm325, %v326, %v327
        %v329 = vrot.slane %v291, 2
        %v330 = vsel %vm325, %v327, %v329
        %v332 = vrot.slane %v292, 2
        %v334 = vsel %vm325, %v329, %v332
        %336 = vrot.lane.b32.xlu0 %v328, 32
        %v337 = vpop.permute.xlu0 %336
        %338 = vrot.lane.b32.xlu0 %v330, 32
        %v339 = vpop.permute.xlu0 %338
        %340 = vrot.lane.b32.xlu0 %v334, 32
        %v341 = vpop.permute.xlu0 %340
        %vm345 = vcmask 392448
        %346 = vst.msk [vmem:[#allocation2] sm:$0xff] %vm345, %v337
        %347 = vst.msk [vmem:[#allocation2 + $0x8] sm:$0xff] %vm345, %v339
        %348 = vst.msk [vmem:[#allocation2 + $0x10] sm:$0xff] %vm345, %v341
        %vm349 = vcmask 1044480
        %v350 = vrot.slane %v289, 3
        %v351 = vrot.slane %v290, 3
        %v352 = vsel %vm349, %v350, %v351
        %v353 = vrot.slane %v291, 3
        %v354 = vsel %vm349, %v351, %v353
        %v356 = vrot.slane %v292, 3
        %v358 = vsel %vm349, %v353, %v356
        %360 = vrot.lane.b32.xlu0 %v352, 48
        %v361 = vpop.permute.xlu0 %360
        %362 = vrot.lane.b32.xlu0 %v354, 48
        %v363 = vpop.permute.xlu0 %362
        %364 = vrot.lane.b32.xlu0 %v358, 48
        %v365 = vpop.permute.xlu0 %364
        %vm369 = vcmask 523648
        %370 = vst.msk [vmem:[#allocation2] sm:$0xff] %vm369, %v361
        %371 = vst.msk [vmem:[#allocation2 + $0x8] sm:$0xff] %vm369, %v363
        %372 = vst.msk [vmem:[#allocation2 + $0x10] sm:$0xff] %vm369, %v365
      $region36: #{stft_pallas.1} parent=31 // pred_fallthru
        _
      %v373 = vld [vmem:[%s271] sm:$0xff]
      %v374 = vld [vmem:[%s271 + $0x8] sm:$0xff]
      %v375 = vld [vmem:[%s271 + $0x10] sm:$0xff]
      %v376 = vld [vmem:[%s271 + $0x18] sm:$0xff]
      %v377 = vld [vmem:[%s271 + $0x20] sm:$0xff]
      %v378 = vld [vmem:[%s271 + $0x28] sm:$0xff]
      %v379 = vld [vmem:[%s271 + $0x30] sm:$0xff]
      %v380 = vld [vmem:[%s271 + $0x38] sm:$0xff]
      %s381 = scalar_lea.vmem %s271, 64
      %v382 = vld [vmem:[%s381] sm:$0xff]
      %v383 = vld [vmem:[%s381 + $0x8] sm:$0xff]
      %v384 = vld [vmem:[%s381 + $0x10] sm:$0xff]
      %v385 = vld [vmem:[%s381 + $0x18] sm:$0xff]
      %v386 = vld [vmem:[%s381 + $0x20] sm:$0xff]
      %v387 = vld [vmem:[%s381 + $0x28] sm:$0xff]
      %v388 = vld [vmem:[%s381 + $0x30] sm:$0xff]
      %v389 = vld [vmem:[%s381 + $0x38] sm:$0xff]
      %v390 = vld [vmem:[#allocation2] sm:$0xff]
      %v391 = vld [vmem:[#allocation2 + $0x8] sm:$0xff]
      %v392 = vld [vmem:[#allocation2 + $0x10] sm:$0xff]
      %vm393 = vcmask 523264
      %v395 = vsel %vm393, %v390, 0
      %v398 = vsel %vm393, %v391, 0
      %v401 = vsel %vm393, %v392, 0
      %403 = vmatprep.subr.mxu0 0.0
      %404 = vmatpush1.msra.mxu0 0.0
      %405 = vmatprep.subr.mxu0 0.0
      %406 = vmatpush1.msra.mxu0 0.0
      %407 = vmatprep.subr.mxu0 0.0
      %408 = vmatpush1.msra.mxu0 0.0
      %409 = vmatprep.subr.mxu0 0.0
      %410 = vmatpush1.msra.mxu0 0.0
      %411 = vmatprep.subr.mxu0 0.0
      %412 = vmatpush1.msra.mxu0 0.0
      %413 = vmatprep.subr.mxu0 0.0
      %414 = vmatpush1.msra.mxu0 0.0
      %415 = vmatprep.subr.mxu0 0.0
      %416 = vmatpush1.msra.mxu0 0.0
      %417 = vmatprep.subr.mxu0 0.0
      %418 = vmatpush1.msra.mxu0 0.0
      %419 = vmatprep.subr.mxu0 0.0
      %v420 = vand.u32 %v380, 4294901760
      %421 = vmatpush1.msra.mxu0 %v420
      %422 = vmatprep.subr.mxu0 0.0
      %v423 = vand.u32 %v379, 4294901760
      %424 = vmatpush1.msra.mxu0 %v423
      %425 = vmatprep.subr.mxu0 0.0
      %v426 = vand.u32 %v378, 4294901760
      %427 = vmatpush1.msra.mxu0 %v426
      %428 = vmatprep.subr.mxu0 0.0
      %v429 = vand.u32 %v377, 4294901760
      %430 = vmatpush1.msra.mxu0 %v429
      %431 = vmatprep.subr.mxu0 0.0
      %v432 = vand.u32 %v376, 4294901760
      %433 = vmatpush1.msra.mxu0 %v432
      %434 = vmatprep.subr.mxu0 0.0
      %v435 = vand.u32 %v375, 4294901760
      %436 = vmatpush1.msra.mxu0 %v435
      %437 = vmatprep.subr.mxu0 0.0
      %v438 = vand.u32 %v374, 4294901760
      %439 = vmatpush1.msra.mxu0 %v438
      %440 = vmatprep.subr.mxu0 0.0
      %v441 = vand.u32 %v373, 4294901760
      %442 = vmatpush1.msra.mxu0 %v441
      %443 = vmatprep.subr.mxu0 0.0
      %444 = vmatpush2.msra.mxu0 0.0
      %445 = vmatprep.subr.mxu0 0.0
      %446 = vmatpush2.msra.mxu0 0.0
      %447 = vmatprep.subr.mxu0 0.0
      %448 = vmatpush2.msra.mxu0 0.0
      %449 = vmatprep.subr.mxu0 0.0
      %450 = vmatpush2.msra.mxu0 0.0
      %451 = vmatprep.subr.mxu0 0.0
      %452 = vmatpush2.msra.mxu0 0.0
      %453 = vmatprep.subr.mxu0 0.0
      %454 = vmatpush2.msra.mxu0 0.0
      %455 = vmatprep.subr.mxu0 0.0
      %456 = vmatpush2.msra.mxu0 0.0
      %457 = vmatprep.subr.mxu0 0.0
      %458 = vmatpush2.msra.mxu0 0.0
      %459 = vmatprep.subr.mxu0 0.0
      %460 = vmatpush2.msra.mxu0 0.0
      %461 = vmatprep.subr.mxu0 0.0
      %462 = vmatpush2.msra.mxu0 0.0
      %463 = vmatprep.subr.mxu0 0.0
      %464 = vmatpush2.msra.mxu0 0.0
      %465 = vmatprep.subr.mxu0 0.0
      %466 = vmatpush2.msra.mxu0 0.0
      %467 = vmatprep.subr.mxu0 0.0
      %468 = vmatpush2.msra.mxu0 0.0
      %469 = vmatprep.subr.mxu0 0.0
      %470 = vmatpush2.msra.mxu0 0.0
      %471 = vmatprep.subr.mxu0 0.0
      %472 = vmatpush2.msra.mxu0 0.0
      %473 = vmatprep.subr.mxu0 0.0
      %474 = vmatpush2.msra.mxu0 0.0
      %475 = vmatprep.mubr.f32.mxu0 0.0
      %v476 = vand.u32 %v395, 4294901760
      %v477 = vsub.f32 %v395, %v476
      %v478 = vand.u32 %v477, 4294901760
      %v479 = vsub.f32 %v477, %v478
      %v480 = vand.u32 %v479, 4294901760
      %481 = vmatmul.mubr.f32.gmra.mxu0 %v480
      %v482 = vpop.f32.mrf.mxu0
      %v483 = vadd.f32 0.0, %v482
      %v484 = vpop.f32.mrf.mxu0
      %485 = vmatprep.mubr.f32.mxu0 0.0
      %v486 = vand.u32 %v398, 4294901760
      %v487 = vsub.f32 %v398, %v486
      %v488 = vand.u32 %v487, 4294901760
      %v489 = vsub.f32 %v487, %v488
      %v490 = vand.u32 %v489, 4294901760
      %491 = vmatmul.mubr.f32.gmra.mxu0 %v490
      %v492 = vpop.f32.mrf.mxu0
      %v493 = vadd.f32 0.0, %v492
      %v494 = vpop.f32.mrf.mxu0
      %495 = vmatprep.mubr.f32.mxu0 0.0
      %v496 = vand.u32 %v401, 4294901760
      %v497 = vsub.f32 %v401, %v496
      %v498 = vand.u32 %v497, 4294901760
      %v499 = vsub.f32 %v497, %v498
      %v500 = vand.u32 %v499, 4294901760
      %501 = vmatmul.mubr.f32.gmra.mxu0 %v500
      %v502 = vpop.f32.mrf.mxu0
      %v503 = vadd.f32 0.0, %v502
      %v504 = vpop.f32.mrf.mxu0
      %505 = vdwg.mxu0
      %506 = vmatprep.subr.mxu0 0.0
      %507 = vmatpush1.msra.mxu0 0.0
      %508 = vmatprep.subr.mxu0 0.0
      %509 = vmatpush1.msra.mxu0 0.0
      %510 = vmatprep.subr.mxu0 0.0
      %511 = vmatpush1.msra.mxu0 0.0
      %512 = vmatprep.subr.mxu0 0.0
      %513 = vmatpush1.msra.mxu0 0.0
      %514 = vmatprep.subr.mxu0 0.0
      %515 = vmatpush1.msra.mxu0 0.0
      %516 = vmatprep.subr.mxu0 0.0
      %517 = vmatpush1.msra.mxu0 0.0
      %518 = vmatprep.subr.mxu0 0.0
      %519 = vmatpush1.msra.mxu0 0.0
      %520 = vmatprep.subr.mxu0 0.0
      %521 = vmatpush1.msra.mxu0 0.0
      %522 = vmatprep.subr.mxu0 0.0
      %v523 = vand.u32 %v380, 4294901760
      %v524 = vsub.f32 %v380, %v523
      %v525 = vand.u32 %v524, 4294901760
      %v526 = vsub.f32 %v524, %v525
      %v527 = vand.u32 %v526, 4294901760
      %528 = vmatpush1.msra.mxu0 %v527
      %529 = vmatprep.subr.mxu0 0.0
      %v530 = vand.u32 %v379, 4294901760
      %v531 = vsub.f32 %v379, %v530
      %v532 = vand.u32 %v531, 4294901760
      %v533 = vsub.f32 %v531, %v532
      %v534 = vand.u32 %v533, 4294901760
      %535 = vmatpush1.msra.mxu0 %v534
      %536 = vmatprep.subr.mxu0 0.0
      %v537 = vand.u32 %v378, 4294901760
      %v538 = vsub.f32 %v378, %v537
      %v539 = vand.u32 %v538, 4294901760
      %v540 = vsub.f32 %v538, %v539
      %v541 = vand.u32 %v540, 4294901760
      %542 = vmatpush1.msra.mxu0 %v541
      %543 = vmatprep.subr.mxu0 0.0
      %v544 = vand.u32 %v377, 4294901760
      %v545 = vsub.f32 %v377, %v544
      %v546 = vand.u32 %v545, 4294901760
      %v547 = vsub.f32 %v545, %v546
      %v548 = vand.u32 %v547, 4294901760
      %549 = vmatpush1.msra.mxu0 %v548
      %550 = vmatprep.subr.mxu0 0.0
      %v551 = vand.u32 %v376, 4294901760
      %v552 = vsub.f32 %v376, %v551
      %v553 = vand.u32 %v552, 4294901760
      %v554 = vsub.f32 %v552, %v553
      %v555 = vand.u32 %v554, 4294901760
      %556 = vmatpush1.msra.mxu0 %v555
      %557 = vmatprep.subr.mxu0 0.0
      %v558 = vand.u32 %v375, 4294901760
      %v559 = vsub.f32 %v375, %v558
      %v560 = vand.u32 %v559, 4294901760
      %v561 = vsub.f32 %v559, %v560
      %v562 = vand.u32 %v561, 4294901760
      %563 = vmatpush1.msra.mxu0 %v562
      %564 = vmatprep.subr.mxu0 0.0
      %v565 = vand.u32 %v374, 4294901760
      %v566 = vsub.f32 %v374, %v565
      %v567 = vand.u32 %v566, 4294901760
      %v568 = vsub.f32 %v566, %v567
      %v569 = vand.u32 %v568, 4294901760
      %570 = vmatpush1.msra.mxu0 %v569
      %571 = vmatprep.subr.mxu0 0.0
      %v572 = vand.u32 %v373, 4294901760
      %v573 = vsub.f32 %v373, %v572
      %v574 = vand.u32 %v573, 4294901760
      %v575 = vsub.f32 %v573, %v574
      %v576 = vand.u32 %v575, 4294901760
      %577 = vmatpush1.msra.mxu0 %v576
      %578 = vmatprep.subr.mxu0 0.0
      %579 = vmatpush2.msra.mxu0 0.0
      %580 = vmatprep.subr.mxu0 0.0
      %581 = vmatpush2.msra.mxu0 0.0
      %582 = vmatprep.subr.mxu0 0.0
      %583 = vmatpush2.msra.mxu0 0.0
      %584 = vmatprep.subr.mxu0 0.0
      %585 = vmatpush2.msra.mxu0 0.0
      %586 = vmatprep.subr.mxu0 0.0
      %587 = vmatpush2.msra.mxu0 0.0
      %588 = vmatprep.subr.mxu0 0.0
      %589 = vmatpush2.msra.mxu0 0.0
      %590 = vmatprep.subr.mxu0 0.0
      %591 = vmatpush2.msra.mxu0 0.0
      %592 = vmatprep.subr.mxu0 0.0
      %593 = vmatpush2.msra.mxu0 0.0
      %594 = vmatprep.subr.mxu0 0.0
      %595 = vmatpush2.msra.mxu0 0.0
      %596 = vmatprep.subr.mxu0 0.0
      %597 = vmatpush2.msra.mxu0 0.0
      %598 = vmatprep.subr.mxu0 0.0
      %599 = vmatpush2.msra.mxu0 0.0
      %600 = vmatprep.subr.mxu0 0.0
      %601 = vmatpush2.msra.mxu0 0.0
      %602 = vmatprep.subr.mxu0 0.0
      %603 = vmatpush2.msra.mxu0 0.0
      %604 = vmatprep.subr.mxu0 0.0
      %605 = vmatpush2.msra.mxu0 0.0
      %606 = vmatprep.subr.mxu0 0.0
      %607 = vmatpush2.msra.mxu0 0.0
      %608 = vmatprep.subr.mxu0 0.0
      %609 = vmatpush2.msra.mxu0 0.0
      %610 = vmatprep.mubr.f32.mxu0 0.0
      %v611 = vand.u32 %v395, 4294901760
      %612 = vmatmul.mubr.f32.gmra.mxu0 %v611
      %v613 = vpop.f32.mrf.mxu0
      %v614 = vadd.f32 %v483, %v613
      %v615 = vpop.f32.mrf.mxu0
      %616 = vmatprep.mubr.f32.mxu0 0.0
      %v617 = vand.u32 %v398, 4294901760
      %618 = vmatmul.mubr.f32.gmra.mxu0 %v617
      %v619 = vpop.f32.mrf.mxu0
      %v620 = vadd.f32 %v493, %v619
      %v621 = vpop.f32.mrf.mxu0
      %622 = vmatprep.mubr.f32.mxu0 0.0
      %v623 = vand.u32 %v401, 4294901760
      %624 = vmatmul.mubr.f32.gmra.mxu0 %v623
      %v625 = vpop.f32.mrf.mxu0
      %v626 = vadd.f32 %v503, %v625
      %v627 = vpop.f32.mrf.mxu0
      %628 = vdwg.mxu0
      %629 = vmatprep.subr.mxu0 0.0
      %630 = vmatpush1.msra.mxu0 0.0
      %631 = vmatprep.subr.mxu0 0.0
      %632 = vmatpush1.msra.mxu0 0.0
      %633 = vmatprep.subr.mxu0 0.0
      %634 = vmatpush1.msra.mxu0 0.0
      %635 = vmatprep.subr.mxu0 0.0
      %636 = vmatpush1.msra.mxu0 0.0
      %637 = vmatprep.subr.mxu0 0.0
      %638 = vmatpush1.msra.mxu0 0.0
      %639 = vmatprep.subr.mxu0 0.0
      %640 = vmatpush1.msra.mxu0 0.0
      %641 = vmatprep.subr.mxu0 0.0
      %642 = vmatpush1.msra.mxu0 0.0
      %643 = vmatprep.subr.mxu0 0.0
      %644 = vmatpush1.msra.mxu0 0.0
      %645 = vmatprep.subr.mxu0 0.0
      %v646 = vand.u32 %v380, 4294901760
      %v647 = vsub.f32 %v380, %v646
      %648 = vmatpush1.msra.mxu0 %v647
      %649 = vmatprep.subr.mxu0 0.0
      %v650 = vand.u32 %v379, 4294901760
      %v651 = vsub.f32 %v379, %v650
      %652 = vmatpush1.msra.mxu0 %v651
      %653 = vmatprep.subr.mxu0 0.0
      %v654 = vand.u32 %v378, 4294901760
      %v655 = vsub.f32 %v378, %v654
      %656 = vmatpush1.msra.mxu0 %v655
      %657 = vmatprep.subr.mxu0 0.0
      %v658 = vand.u32 %v377, 4294901760
      %v659 = vsub.f32 %v377, %v658
      %660 = vmatpush1.msra.mxu0 %v659
      %661 = vmatprep.subr.mxu0 0.0
      %v662 = vand.u32 %v376, 4294901760
      %v663 = vsub.f32 %v376, %v662
      %664 = vmatpush1.msra.mxu0 %v663
      %665 = vmatprep.subr.mxu0 0.0
      %v666 = vand.u32 %v375, 4294901760
      %v667 = vsub.f32 %v375, %v666
      %668 = vmatpush1.msra.mxu0 %v667
      %669 = vmatprep.subr.mxu0 0.0
      %v670 = vand.u32 %v374, 4294901760
      %v671 = vsub.f32 %v374, %v670
      %672 = vmatpush1.msra.mxu0 %v671
      %673 = vmatprep.subr.mxu0 0.0
      %v674 = vand.u32 %v373, 4294901760
      %v675 = vsub.f32 %v373, %v674
      %676 = vmatpush1.msra.mxu0 %v675
      %677 = vmatprep.subr.mxu0 0.0
      %678 = vmatpush2.msra.mxu0 0.0
      %679 = vmatprep.subr.mxu0 0.0
      %680 = vmatpush2.msra.mxu0 0.0
      %681 = vmatprep.subr.mxu0 0.0
      %682 = vmatpush2.msra.mxu0 0.0
      %683 = vmatprep.subr.mxu0 0.0
      %684 = vmatpush2.msra.mxu0 0.0
      %685 = vmatprep.subr.mxu0 0.0
      %686 = vmatpush2.msra.mxu0 0.0
      %687 = vmatprep.subr.mxu0 0.0
      %688 = vmatpush2.msra.mxu0 0.0
      %689 = vmatprep.subr.mxu0 0.0
      %690 = vmatpush2.msra.mxu0 0.0
      %691 = vmatprep.subr.mxu0 0.0
      %692 = vmatpush2.msra.mxu0 0.0
      %693 = vmatprep.subr.mxu0 0.0
      %694 = vmatpush2.msra.mxu0 0.0
      %695 = vmatprep.subr.mxu0 0.0
      %696 = vmatpush2.msra.mxu0 0.0
      %697 = vmatprep.subr.mxu0 0.0
      %698 = vmatpush2.msra.mxu0 0.0
      %699 = vmatprep.subr.mxu0 0.0
      %700 = vmatpush2.msra.mxu0 0.0
      %701 = vmatprep.subr.mxu0 0.0
      %702 = vmatpush2.msra.mxu0 0.0
      %703 = vmatprep.subr.mxu0 0.0
      %704 = vmatpush2.msra.mxu0 0.0
      %705 = vmatprep.subr.mxu0 0.0
      %706 = vmatpush2.msra.mxu0 0.0
      %707 = vmatprep.subr.mxu0 0.0
      %708 = vmatpush2.msra.mxu0 0.0
      %709 = vmatprep.mubr.f32.mxu0 0.0
      %v710 = vand.u32 %v395, 4294901760
      %v711 = vsub.f32 %v395, %v710
      %712 = vmatmul.mubr.f32.gmra.mxu0 %v711
      %v713 = vpop.f32.mrf.mxu0
      %v714 = vadd.f32 %v614, %v713
      %v715 = vpop.f32.mrf.mxu0
      %716 = vmatprep.mubr.f32.mxu0 0.0
      %v717 = vand.u32 %v398, 4294901760
      %v718 = vsub.f32 %v398, %v717
      %719 = vmatmul.mubr.f32.gmra.mxu0 %v718
      %v720 = vpop.f32.mrf.mxu0
      %v721 = vadd.f32 %v620, %v720
      %v722 = vpop.f32.mrf.mxu0
      %723 = vmatprep.mubr.f32.mxu0 0.0
      %v724 = vand.u32 %v401, 4294901760
      %v725 = vsub.f32 %v401, %v724
      %726 = vmatmul.mubr.f32.gmra.mxu0 %v725
      %v727 = vpop.f32.mrf.mxu0
      %v728 = vadd.f32 %v626, %v727
      %v729 = vpop.f32.mrf.mxu0
      %730 = vdwg.mxu0
      %731 = vmatprep.subr.mxu0 0.0
      %732 = vmatpush1.msra.mxu0 0.0
      %733 = vmatprep.subr.mxu0 0.0
      %734 = vmatpush1.msra.mxu0 0.0
      %735 = vmatprep.subr.mxu0 0.0
      %736 = vmatpush1.msra.mxu0 0.0
      %737 = vmatprep.subr.mxu0 0.0
      %738 = vmatpush1.msra.mxu0 0.0
      %739 = vmatprep.subr.mxu0 0.0
      %740 = vmatpush1.msra.mxu0 0.0
      %741 = vmatprep.subr.mxu0 0.0
      %742 = vmatpush1.msra.mxu0 0.0
      %743 = vmatprep.subr.mxu0 0.0
      %744 = vmatpush1.msra.mxu0 0.0
      %745 = vmatprep.subr.mxu0 0.0
      %746 = vmatpush1.msra.mxu0 0.0
      %747 = vmatprep.subr.mxu0 0.0
      %v748 = vand.u32 %v380, 4294901760
      %749 = vmatpush1.msra.mxu0 %v748
      %750 = vmatprep.subr.mxu0 0.0
      %v751 = vand.u32 %v379, 4294901760
      %752 = vmatpush1.msra.mxu0 %v751
      %753 = vmatprep.subr.mxu0 0.0
      %v754 = vand.u32 %v378, 4294901760
      %755 = vmatpush1.msra.mxu0 %v754
      %756 = vmatprep.subr.mxu0 0.0
      %v757 = vand.u32 %v377, 4294901760
      %758 = vmatpush1.msra.mxu0 %v757
      %759 = vmatprep.subr.mxu0 0.0
      %v760 = vand.u32 %v376, 4294901760
      %761 = vmatpush1.msra.mxu0 %v760
      %762 = vmatprep.subr.mxu0 0.0
      %v763 = vand.u32 %v375, 4294901760
      %764 = vmatpush1.msra.mxu0 %v763
      %765 = vmatprep.subr.mxu0 0.0
      %v766 = vand.u32 %v374, 4294901760
      %767 = vmatpush1.msra.mxu0 %v766
      %768 = vmatprep.subr.mxu0 0.0
      %v769 = vand.u32 %v373, 4294901760
      %770 = vmatpush1.msra.mxu0 %v769
      %771 = vmatprep.subr.mxu0 0.0
      %772 = vmatpush2.msra.mxu0 0.0
      %773 = vmatprep.subr.mxu0 0.0
      %774 = vmatpush2.msra.mxu0 0.0
      %775 = vmatprep.subr.mxu0 0.0
      %776 = vmatpush2.msra.mxu0 0.0
      %777 = vmatprep.subr.mxu0 0.0
      %778 = vmatpush2.msra.mxu0 0.0
      %779 = vmatprep.subr.mxu0 0.0
      %780 = vmatpush2.msra.mxu0 0.0
      %781 = vmatprep.subr.mxu0 0.0
      %782 = vmatpush2.msra.mxu0 0.0
      %783 = vmatprep.subr.mxu0 0.0
      %784 = vmatpush2.msra.mxu0 0.0
      %785 = vmatprep.subr.mxu0 0.0
      %786 = vmatpush2.msra.mxu0 0.0
      %787 = vmatprep.subr.mxu0 0.0
      %788 = vmatpush2.msra.mxu0 0.0
      %789 = vmatprep.subr.mxu0 0.0
      %790 = vmatpush2.msra.mxu0 0.0
      %791 = vmatprep.subr.mxu0 0.0
      %792 = vmatpush2.msra.mxu0 0.0
      %793 = vmatprep.subr.mxu0 0.0
      %794 = vmatpush2.msra.mxu0 0.0
      %795 = vmatprep.subr.mxu0 0.0
      %796 = vmatpush2.msra.mxu0 0.0
      %797 = vmatprep.subr.mxu0 0.0
      %798 = vmatpush2.msra.mxu0 0.0
      %799 = vmatprep.subr.mxu0 0.0
      %800 = vmatpush2.msra.mxu0 0.0
      %801 = vmatprep.subr.mxu0 0.0
      %802 = vmatpush2.msra.mxu0 0.0
      %803 = vmatprep.mubr.f32.mxu0 0.0
      %v804 = vand.u32 %v395, 4294901760
      %v805 = vsub.f32 %v395, %v804
      %v806 = vand.u32 %v805, 4294901760
      %807 = vmatmul.mubr.f32.gmra.mxu0 %v806
      %v808 = vpop.f32.mrf.mxu0
      %v809 = vadd.f32 %v714, %v808
      %v810 = vpop.f32.mrf.mxu0
      %811 = vmatprep.mubr.f32.mxu0 0.0
      %v812 = vand.u32 %v398, 4294901760
      %v813 = vsub.f32 %v398, %v812
      %v814 = vand.u32 %v813, 4294901760
      %815 = vmatmul.mubr.f32.gmra.mxu0 %v814
      %v816 = vpop.f32.mrf.mxu0
      %v817 = vadd.f32 %v721, %v816
      %v818 = vpop.f32.mrf.mxu0
      %819 = vmatprep.mubr.f32.mxu0 0.0
      %v820 = vand.u32 %v401, 4294901760
      %v821 = vsub.f32 %v401, %v820
      %v822 = vand.u32 %v821, 4294901760
      %823 = vmatmul.mubr.f32.gmra.mxu0 %v822
      %v824 = vpop.f32.mrf.mxu0
      %v825 = vadd.f32 %v728, %v824
      %v826 = vpop.f32.mrf.mxu0
      %827 = vdwg.mxu0
      %828 = vmatprep.subr.mxu0 0.0
      %829 = vmatpush1.msra.mxu0 0.0
      %830 = vmatprep.subr.mxu0 0.0
      %831 = vmatpush1.msra.mxu0 0.0
      %832 = vmatprep.subr.mxu0 0.0
      %833 = vmatpush1.msra.mxu0 0.0
      %834 = vmatprep.subr.mxu0 0.0
      %835 = vmatpush1.msra.mxu0 0.0
      %836 = vmatprep.subr.mxu0 0.0
      %837 = vmatpush1.msra.mxu0 0.0
      %838 = vmatprep.subr.mxu0 0.0
      %839 = vmatpush1.msra.mxu0 0.0
      %840 = vmatprep.subr.mxu0 0.0
      %841 = vmatpush1.msra.mxu0 0.0
      %842 = vmatprep.subr.mxu0 0.0
      %843 = vmatpush1.msra.mxu0 0.0
      %844 = vmatprep.subr.mxu0 0.0
      %v845 = vand.u32 %v380, 4294901760
      %v846 = vsub.f32 %v380, %v845
      %v847 = vand.u32 %v846, 4294901760
      %848 = vmatpush1.msra.mxu0 %v847
      %849 = vmatprep.subr.mxu0 0.0
      %v850 = vand.u32 %v379, 4294901760
      %v851 = vsub.f32 %v379, %v850
      %v852 = vand.u32 %v851, 4294901760
      %853 = vmatpush1.msra.mxu0 %v852
      %854 = vmatprep.subr.mxu0 0.0
      %v855 = vand.u32 %v378, 4294901760
      %v856 = vsub.f32 %v378, %v855
      %v857 = vand.u32 %v856, 4294901760
      %858 = vmatpush1.msra.mxu0 %v857
      %859 = vmatprep.subr.mxu0 0.0
      %v860 = vand.u32 %v377, 4294901760
      %v861 = vsub.f32 %v377, %v860
      %v862 = vand.u32 %v861, 4294901760
      %863 = vmatpush1.msra.mxu0 %v862
      %864 = vmatprep.subr.mxu0 0.0
      %v865 = vand.u32 %v376, 4294901760
      %v866 = vsub.f32 %v376, %v865
      %v867 = vand.u32 %v866, 4294901760
      %868 = vmatpush1.msra.mxu0 %v867
      %869 = vmatprep.subr.mxu0 0.0
      %v870 = vand.u32 %v375, 4294901760
      %v871 = vsub.f32 %v375, %v870
      %v872 = vand.u32 %v871, 4294901760
      %873 = vmatpush1.msra.mxu0 %v872
      %874 = vmatprep.subr.mxu0 0.0
      %v875 = vand.u32 %v374, 4294901760
      %v876 = vsub.f32 %v374, %v875
      %v877 = vand.u32 %v876, 4294901760
      %878 = vmatpush1.msra.mxu0 %v877
      %879 = vmatprep.subr.mxu0 0.0
      %v880 = vand.u32 %v373, 4294901760
      %v881 = vsub.f32 %v373, %v880
      %v882 = vand.u32 %v881, 4294901760
      %883 = vmatpush1.msra.mxu0 %v882
      %884 = vmatprep.subr.mxu0 0.0
      %885 = vmatpush2.msra.mxu0 0.0
      %886 = vmatprep.subr.mxu0 0.0
      %887 = vmatpush2.msra.mxu0 0.0
      %888 = vmatprep.subr.mxu0 0.0
      %889 = vmatpush2.msra.mxu0 0.0
      %890 = vmatprep.subr.mxu0 0.0
      %891 = vmatpush2.msra.mxu0 0.0
      %892 = vmatprep.subr.mxu0 0.0
      %893 = vmatpush2.msra.mxu0 0.0
      %894 = vmatprep.subr.mxu0 0.0
      %895 = vmatpush2.msra.mxu0 0.0
      %896 = vmatprep.subr.mxu0 0.0
      %897 = vmatpush2.msra.mxu0 0.0
      %898 = vmatprep.subr.mxu0 0.0
      %899 = vmatpush2.msra.mxu0 0.0
      %900 = vmatprep.subr.mxu0 0.0
      %901 = vmatpush2.msra.mxu0 0.0
      %902 = vmatprep.subr.mxu0 0.0
      %903 = vmatpush2.msra.mxu0 0.0
      %904 = vmatprep.subr.mxu0 0.0
      %905 = vmatpush2.msra.mxu0 0.0
      %906 = vmatprep.subr.mxu0 0.0
      %907 = vmatpush2.msra.mxu0 0.0
      %908 = vmatprep.subr.mxu0 0.0
      %909 = vmatpush2.msra.mxu0 0.0
      %910 = vmatprep.subr.mxu0 0.0
      %911 = vmatpush2.msra.mxu0 0.0
      %912 = vmatprep.subr.mxu0 0.0
      %913 = vmatpush2.msra.mxu0 0.0
      %914 = vmatprep.subr.mxu0 0.0
      %915 = vmatpush2.msra.mxu0 0.0
      %916 = vmatprep.mubr.f32.mxu0 0.0
      %v917 = vand.u32 %v395, 4294901760
      %918 = vmatmul.mubr.f32.gmra.mxu0 %v917
      %v919 = vpop.f32.mrf.mxu0
      %v920 = vadd.f32 %v809, %v919
      %v921 = vpop.f32.mrf.mxu0
      %922 = vmatprep.mubr.f32.mxu0 0.0
      %v923 = vand.u32 %v398, 4294901760
      %924 = vmatmul.mubr.f32.gmra.mxu0 %v923
      %v925 = vpop.f32.mrf.mxu0
      %v926 = vadd.f32 %v817, %v925
      %v927 = vpop.f32.mrf.mxu0
      %928 = vmatprep.mubr.f32.mxu0 0.0
      %v929 = vand.u32 %v401, 4294901760
      %930 = vmatmul.mubr.f32.gmra.mxu0 %v929
      %v931 = vpop.f32.mrf.mxu0
      %v932 = vadd.f32 %v825, %v931
      %v933 = vpop.f32.mrf.mxu0
      %934 = vdwg.mxu0
      %935 = vmatprep.subr.mxu0 0.0
      %936 = vmatpush1.msra.mxu0 0.0
      %937 = vmatprep.subr.mxu0 0.0
      %938 = vmatpush1.msra.mxu0 0.0
      %939 = vmatprep.subr.mxu0 0.0
      %940 = vmatpush1.msra.mxu0 0.0
      %941 = vmatprep.subr.mxu0 0.0
      %942 = vmatpush1.msra.mxu0 0.0
      %943 = vmatprep.subr.mxu0 0.0
      %944 = vmatpush1.msra.mxu0 0.0
      %945 = vmatprep.subr.mxu0 0.0
      %946 = vmatpush1.msra.mxu0 0.0
      %947 = vmatprep.subr.mxu0 0.0
      %948 = vmatpush1.msra.mxu0 0.0
      %949 = vmatprep.subr.mxu0 0.0
      %950 = vmatpush1.msra.mxu0 0.0
      %951 = vmatprep.subr.mxu0 0.0
      %v952 = vand.u32 %v380, 4294901760
      %953 = vmatpush1.msra.mxu0 %v952
      %954 = vmatprep.subr.mxu0 0.0
      %v955 = vand.u32 %v379, 4294901760
      %956 = vmatpush1.msra.mxu0 %v955
      %957 = vmatprep.subr.mxu0 0.0
      %v958 = vand.u32 %v378, 4294901760
      %959 = vmatpush1.msra.mxu0 %v958
      %960 = vmatprep.subr.mxu0 0.0
      %v961 = vand.u32 %v377, 4294901760
      %962 = vmatpush1.msra.mxu0 %v961
      %963 = vmatprep.subr.mxu0 0.0
      %v964 = vand.u32 %v376, 4294901760
      %965 = vmatpush1.msra.mxu0 %v964
      %966 = vmatprep.subr.mxu0 0.0
      %v967 = vand.u32 %v375, 4294901760
      %968 = vmatpush1.msra.mxu0 %v967
      %969 = vmatprep.subr.mxu0 0.0
      %v970 = vand.u32 %v374, 4294901760
      %971 = vmatpush1.msra.mxu0 %v970
      %972 = vmatprep.subr.mxu0 0.0
      %v973 = vand.u32 %v373, 4294901760
      %974 = vmatpush1.msra.mxu0 %v973
      %975 = vmatprep.subr.mxu0 0.0
      %976 = vmatpush2.msra.mxu0 0.0
      %977 = vmatprep.subr.mxu0 0.0
      %978 = vmatpush2.msra.mxu0 0.0
      %979 = vmatprep.subr.mxu0 0.0
      %980 = vmatpush2.msra.mxu0 0.0
      %981 = vmatprep.subr.mxu0 0.0
      %982 = vmatpush2.msra.mxu0 0.0
      %983 = vmatprep.subr.mxu0 0.0
      %984 = vmatpush2.msra.mxu0 0.0
      %985 = vmatprep.subr.mxu0 0.0
      %986 = vmatpush2.msra.mxu0 0.0
      %987 = vmatprep.subr.mxu0 0.0
      %988 = vmatpush2.msra.mxu0 0.0
      %989 = vmatprep.subr.mxu0 0.0
      %990 = vmatpush2.msra.mxu0 0.0
      %991 = vmatprep.subr.mxu0 0.0
      %992 = vmatpush2.msra.mxu0 0.0
      %993 = vmatprep.subr.mxu0 0.0
      %994 = vmatpush2.msra.mxu0 0.0
      %995 = vmatprep.subr.mxu0 0.0
      %996 = vmatpush2.msra.mxu0 0.0
      %997 = vmatprep.subr.mxu0 0.0
      %998 = vmatpush2.msra.mxu0 0.0
      %999 = vmatprep.subr.mxu0 0.0
      %1000 = vmatpush2.msra.mxu0 0.0
      %1001 = vmatprep.subr.mxu0 0.0
      %1002 = vmatpush2.msra.mxu0 0.0
      %1003 = vmatprep.subr.mxu0 0.0
      %1004 = vmatpush2.msra.mxu0 0.0
      %1005 = vmatprep.subr.mxu0 0.0
      %1006 = vmatpush2.msra.mxu0 0.0
      %1007 = vmatprep.mubr.f32.mxu0 0.0
      %v1008 = vand.u32 %v395, 4294901760
      %1009 = vmatmul.mubr.f32.gmra.mxu0 %v1008
      %v1010 = vpop.f32.mrf.mxu0
      %v1011 = vadd.f32 %v920, %v1010
      %v1012 = vpop.f32.mrf.mxu0
      %1013 = vmatprep.mubr.f32.mxu0 0.0
      %v1014 = vand.u32 %v398, 4294901760
      %1015 = vmatmul.mubr.f32.gmra.mxu0 %v1014
      %v1016 = vpop.f32.mrf.mxu0
      %v1017 = vadd.f32 %v926, %v1016
      %v1018 = vpop.f32.mrf.mxu0
      %1019 = vmatprep.mubr.f32.mxu0 0.0
      %v1020 = vand.u32 %v401, 4294901760
      %1021 = vmatmul.mubr.f32.gmra.mxu0 %v1020
      %v1022 = vpop.f32.mrf.mxu0
      %v1023 = vadd.f32 %v932, %v1022
      %v1024 = vpop.f32.mrf.mxu0
      %1025 = vdwg.mxu0
      %1026 = vmatprep.subr.mxu0 0.0
      %1027 = vmatpush1.msra.mxu0 0.0
      %1028 = vmatprep.subr.mxu0 0.0
      %1029 = vmatpush1.msra.mxu0 0.0
      %1030 = vmatprep.subr.mxu0 0.0
      %1031 = vmatpush1.msra.mxu0 0.0
      %1032 = vmatprep.subr.mxu0 0.0
      %1033 = vmatpush1.msra.mxu0 0.0
      %1034 = vmatprep.subr.mxu0 0.0
      %1035 = vmatpush1.msra.mxu0 0.0
      %1036 = vmatprep.subr.mxu0 0.0
      %1037 = vmatpush1.msra.mxu0 0.0
      %1038 = vmatprep.subr.mxu0 0.0
      %1039 = vmatpush1.msra.mxu0 0.0
      %1040 = vmatprep.subr.mxu0 0.0
      %1041 = vmatpush1.msra.mxu0 0.0
      %1042 = vmatprep.subr.mxu0 0.0
      %v1043 = vand.u32 %v389, 4294901760
      %1044 = vmatpush1.msra.mxu0 %v1043
      %1045 = vmatprep.subr.mxu0 0.0
      %v1046 = vand.u32 %v388, 4294901760
      %1047 = vmatpush1.msra.mxu0 %v1046
      %1048 = vmatprep.subr.mxu0 0.0
      %v1049 = vand.u32 %v387, 4294901760
      %1050 = vmatpush1.msra.mxu0 %v1049
      %1051 = vmatprep.subr.mxu0 0.0
      %v1052 = vand.u32 %v386, 4294901760
      %1053 = vmatpush1.msra.mxu0 %v1052
      %1054 = vmatprep.subr.mxu0 0.0
      %v1055 = vand.u32 %v385, 4294901760
      %1056 = vmatpush1.msra.mxu0 %v1055
      %1057 = vmatprep.subr.mxu0 0.0
      %v1058 = vand.u32 %v384, 4294901760
      %1059 = vmatpush1.msra.mxu0 %v1058
      %1060 = vmatprep.subr.mxu0 0.0
      %v1061 = vand.u32 %v383, 4294901760
      %1062 = vmatpush1.msra.mxu0 %v1061
      %1063 = vmatprep.subr.mxu0 0.0
      %v1064 = vand.u32 %v382, 4294901760
      %1065 = vmatpush1.msra.mxu0 %v1064
      %1066 = vmatprep.subr.mxu0 0.0
      %1067 = vmatpush2.msra.mxu0 0.0
      %1068 = vmatprep.subr.mxu0 0.0
      %1069 = vmatpush2.msra.mxu0 0.0
      %1070 = vmatprep.subr.mxu0 0.0
      %1071 = vmatpush2.msra.mxu0 0.0
      %1072 = vmatprep.subr.mxu0 0.0
      %1073 = vmatpush2.msra.mxu0 0.0
      %1074 = vmatprep.subr.mxu0 0.0
      %1075 = vmatpush2.msra.mxu0 0.0
      %1076 = vmatprep.subr.mxu0 0.0
      %1077 = vmatpush2.msra.mxu0 0.0
      %1078 = vmatprep.subr.mxu0 0.0
      %1079 = vmatpush2.msra.mxu0 0.0
      %1080 = vmatprep.subr.mxu0 0.0
      %1081 = vmatpush2.msra.mxu0 0.0
      %1082 = vmatprep.subr.mxu0 0.0
      %1083 = vmatpush2.msra.mxu0 0.0
      %1084 = vmatprep.subr.mxu0 0.0
      %1085 = vmatpush2.msra.mxu0 0.0
      %1086 = vmatprep.subr.mxu0 0.0
      %1087 = vmatpush2.msra.mxu0 0.0
      %1088 = vmatprep.subr.mxu0 0.0
      %1089 = vmatpush2.msra.mxu0 0.0
      %1090 = vmatprep.subr.mxu0 0.0
      %1091 = vmatpush2.msra.mxu0 0.0
      %1092 = vmatprep.subr.mxu0 0.0
      %1093 = vmatpush2.msra.mxu0 0.0
      %1094 = vmatprep.subr.mxu0 0.0
      %1095 = vmatpush2.msra.mxu0 0.0
      %1096 = vmatprep.subr.mxu0 0.0
      %1097 = vmatpush2.msra.mxu0 0.0
      %1098 = vmatprep.mubr.f32.mxu0 0.0
      %v1099 = vand.u32 %v395, 4294901760
      %v1100 = vsub.f32 %v395, %v1099
      %v1101 = vand.u32 %v1100, 4294901760
      %v1102 = vsub.f32 %v1100, %v1101
      %v1103 = vand.u32 %v1102, 4294901760
      %1104 = vmatmul.mubr.f32.gmra.mxu0 %v1103
      %v1105 = vpop.f32.mrf.mxu0
      %v1106 = vadd.f32 0.0, %v1105
      %v1107 = vpop.f32.mrf.mxu0
      %1108 = vmatprep.mubr.f32.mxu0 0.0
      %v1109 = vand.u32 %v398, 4294901760
      %v1110 = vsub.f32 %v398, %v1109
      %v1111 = vand.u32 %v1110, 4294901760
      %v1112 = vsub.f32 %v1110, %v1111
      %v1113 = vand.u32 %v1112, 4294901760
      %1114 = vmatmul.mubr.f32.gmra.mxu0 %v1113
      %v1115 = vpop.f32.mrf.mxu0
      %v1116 = vadd.f32 0.0, %v1115
      %v1117 = vpop.f32.mrf.mxu0
      %1118 = vmatprep.mubr.f32.mxu0 0.0
      %v1119 = vand.u32 %v401, 4294901760
      %v1120 = vsub.f32 %v401, %v1119
      %v1121 = vand.u32 %v1120, 4294901760
      %v1122 = vsub.f32 %v1120, %v1121
      %v1123 = vand.u32 %v1122, 4294901760
      %1124 = vmatmul.mubr.f32.gmra.mxu0 %v1123
      %v1125 = vpop.f32.mrf.mxu0
      %v1126 = vadd.f32 0.0, %v1125
      %v1127 = vpop.f32.mrf.mxu0
      %1128 = vdwg.mxu0
      %1129 = vmatprep.subr.mxu0 0.0
      %1130 = vmatpush1.msra.mxu0 0.0
      %1131 = vmatprep.subr.mxu0 0.0
      %1132 = vmatpush1.msra.mxu0 0.0
      %1133 = vmatprep.subr.mxu0 0.0
      %1134 = vmatpush1.msra.mxu0 0.0
      %1135 = vmatprep.subr.mxu0 0.0
      %1136 = vmatpush1.msra.mxu0 0.0
      %1137 = vmatprep.subr.mxu0 0.0
      %1138 = vmatpush1.msra.mxu0 0.0
      %1139 = vmatprep.subr.mxu0 0.0
      %1140 = vmatpush1.msra.mxu0 0.0
      %1141 = vmatprep.subr.mxu0 0.0
      %1142 = vmatpush1.msra.mxu0 0.0
      %1143 = vmatprep.subr.mxu0 0.0
      %1144 = vmatpush1.msra.mxu0 0.0
      %1145 = vmatprep.subr.mxu0 0.0
      %v1146 = vand.u32 %v389, 4294901760
      %v1147 = vsub.f32 %v389, %v1146
      %v1148 = vand.u32 %v1147, 4294901760
      %v1149 = vsub.f32 %v1147, %v1148
      %v1150 = vand.u32 %v1149, 4294901760
      %1151 = vmatpush1.msra.mxu0 %v1150
      %1152 = vmatprep.subr.mxu0 0.0
      %v1153 = vand.u32 %v388, 4294901760
      %v1154 = vsub.f32 %v388, %v1153
      %v1155 = vand.u32 %v1154, 4294901760
      %v1156 = vsub.f32 %v1154, %v1155
      %v1157 = vand.u32 %v1156, 4294901760
      %1158 = vmatpush1.msra.mxu0 %v1157
      %1159 = vmatprep.subr.mxu0 0.0
      %v1160 = vand.u32 %v387, 4294901760
      %v1161 = vsub.f32 %v387, %v1160
      %v1162 = vand.u32 %v1161, 4294901760
      %v1163 = vsub.f32 %v1161, %v1162
      %v1164 = vand.u32 %v1163, 4294901760
      %1165 = vmatpush1.msra.mxu0 %v1164
      %1166 = vmatprep.subr.mxu0 0.0
      %v1167 = vand.u32 %v386, 4294901760
      %v1168 = vsub.f32 %v386, %v1167
      %v1169 = vand.u32 %v1168, 4294901760
      %v1170 = vsub.f32 %v1168, %v1169
      %v1171 = vand.u32 %v1170, 4294901760
      %1172 = vmatpush1.msra.mxu0 %v1171
      %1173 = vmatprep.subr.mxu0 0.0
      %v1174 = vand.u32 %v385, 4294901760
      %v1175 = vsub.f32 %v385, %v1174
      %v1176 = vand.u32 %v1175, 4294901760
      %v1177 = vsub.f32 %v1175, %v1176
      %v1178 = vand.u32 %v1177, 4294901760
      %1179 = vmatpush1.msra.mxu0 %v1178
      %1180 = vmatprep.subr.mxu0 0.0
      %v1181 = vand.u32 %v384, 4294901760
      %v1182 = vsub.f32 %v384, %v1181
      %v1183 = vand.u32 %v1182, 4294901760
      %v1184 = vsub.f32 %v1182, %v1183
      %v1185 = vand.u32 %v1184, 4294901760
      %1186 = vmatpush1.msra.mxu0 %v1185
      %1187 = vmatprep.subr.mxu0 0.0
      %v1188 = vand.u32 %v383, 4294901760
      %v1189 = vsub.f32 %v383, %v1188
      %v1190 = vand.u32 %v1189, 4294901760
      %v1191 = vsub.f32 %v1189, %v1190
      %v1192 = vand.u32 %v1191, 4294901760
      %1193 = vmatpush1.msra.mxu0 %v1192
      %1194 = vmatprep.subr.mxu0 0.0
      %v1195 = vand.u32 %v382, 4294901760
      %v1196 = vsub.f32 %v382, %v1195
      %v1197 = vand.u32 %v1196, 4294901760
      %v1198 = vsub.f32 %v1196, %v1197
      %v1199 = vand.u32 %v1198, 4294901760
      %1200 = vmatpush1.msra.mxu0 %v1199
      %1201 = vmatprep.subr.mxu0 0.0
      %1202 = vmatpush2.msra.mxu0 0.0
      %1203 = vmatprep.subr.mxu0 0.0
      %1204 = vmatpush2.msra.mxu0 0.0
      %1205 = vmatprep.subr.mxu0 0.0
      %1206 = vmatpush2.msra.mxu0 0.0
      %1207 = vmatprep.subr.mxu0 0.0
      %1208 = vmatpush2.msra.mxu0 0.0
      %1209 = vmatprep.subr.mxu0 0.0
      %1210 = vmatpush2.msra.mxu0 0.0
      %1211 = vmatprep.subr.mxu0 0.0
      %1212 = vmatpush2.msra.mxu0 0.0
      %1213 = vmatprep.subr.mxu0 0.0
      %1214 = vmatpush2.msra.mxu0 0.0
      %1215 = vmatprep.subr.mxu0 0.0
      %1216 = vmatpush2.msra.mxu0 0.0
      %1217 = vmatprep.subr.mxu0 0.0
      %1218 = vmatpush2.msra.mxu0 0.0
      %1219 = vmatprep.subr.mxu0 0.0
      %1220 = vmatpush2.msra.mxu0 0.0
      %1221 = vmatprep.subr.mxu0 0.0
      %1222 = vmatpush2.msra.mxu0 0.0
      %1223 = vmatprep.subr.mxu0 0.0
      %1224 = vmatpush2.msra.mxu0 0.0
      %1225 = vmatprep.subr.mxu0 0.0
      %1226 = vmatpush2.msra.mxu0 0.0
      %1227 = vmatprep.subr.mxu0 0.0
      %1228 = vmatpush2.msra.mxu0 0.0
      %1229 = vmatprep.subr.mxu0 0.0
      %1230 = vmatpush2.msra.mxu0 0.0
      %1231 = vmatprep.subr.mxu0 0.0
      %1232 = vmatpush2.msra.mxu0 0.0
      %1233 = vmatprep.mubr.f32.mxu0 0.0
      %v1234 = vand.u32 %v395, 4294901760
      %1235 = vmatmul.mubr.f32.gmra.mxu0 %v1234
      %v1236 = vpop.f32.mrf.mxu0
      %v1237 = vadd.f32 %v1106, %v1236
      %v1238 = vpop.f32.mrf.mxu0
      %1239 = vmatprep.mubr.f32.mxu0 0.0
      %v1240 = vand.u32 %v398, 4294901760
      %1241 = vmatmul.mubr.f32.gmra.mxu0 %v1240
      %v1242 = vpop.f32.mrf.mxu0
      %v1243 = vadd.f32 %v1116, %v1242
      %v1244 = vpop.f32.mrf.mxu0
      %1245 = vmatprep.mubr.f32.mxu0 0.0
      %v1246 = vand.u32 %v401, 4294901760
      %1247 = vmatmul.mubr.f32.gmra.mxu0 %v1246
      %v1248 = vpop.f32.mrf.mxu0
      %v1249 = vadd.f32 %v1126, %v1248
      %v1250 = vpop.f32.mrf.mxu0
      %1251 = vdwg.mxu0
      %1252 = vmatprep.subr.mxu0 0.0
      %1253 = vmatpush1.msra.mxu0 0.0
      %1254 = vmatprep.subr.mxu0 0.0
      %1255 = vmatpush1.msra.mxu0 0.0
      %1256 = vmatprep.subr.mxu0 0.0
      %1257 = vmatpush1.msra.mxu0 0.0
      %1258 = vmatprep.subr.mxu0 0.0
      %1259 = vmatpush1.msra.mxu0 0.0
      %1260 = vmatprep.subr.mxu0 0.0
      %1261 = vmatpush1.msra.mxu0 0.0
      %1262 = vmatprep.subr.mxu0 0.0
      %1263 = vmatpush1.msra.mxu0 0.0
      %1264 = vmatprep.subr.mxu0 0.0
      %1265 = vmatpush1.msra.mxu0 0.0
      %1266 = vmatprep.subr.mxu0 0.0
      %1267 = vmatpush1.msra.mxu0 0.0
      %1268 = vmatprep.subr.mxu0 0.0
      %v1269 = vand.u32 %v389, 4294901760
      %v1270 = vsub.f32 %v389, %v1269
      %1271 = vmatpush1.msra.mxu0 %v1270
      %1272 = vmatprep.subr.mxu0 0.0
      %v1273 = vand.u32 %v388, 4294901760
      %v1274 = vsub.f32 %v388, %v1273
      %1275 = vmatpush1.msra.mxu0 %v1274
      %1276 = vmatprep.subr.mxu0 0.0
      %v1277 = vand.u32 %v387, 4294901760
      %v1278 = vsub.f32 %v387, %v1277
      %1279 = vmatpush1.msra.mxu0 %v1278
      %1280 = vmatprep.subr.mxu0 0.0
      %v1281 = vand.u32 %v386, 4294901760
      %v1282 = vsub.f32 %v386, %v1281
      %1283 = vmatpush1.msra.mxu0 %v1282
      %1284 = vmatprep.subr.mxu0 0.0
      %v1285 = vand.u32 %v385, 4294901760
      %v1286 = vsub.f32 %v385, %v1285
      %1287 = vmatpush1.msra.mxu0 %v1286
      %1288 = vmatprep.subr.mxu0 0.0
      %v1289 = vand.u32 %v384, 4294901760
      %v1290 = vsub.f32 %v384, %v1289
      %1291 = vmatpush1.msra.mxu0 %v1290
      %1292 = vmatprep.subr.mxu0 0.0
      %v1293 = vand.u32 %v383, 4294901760
      %v1294 = vsub.f32 %v383, %v1293
      %1295 = vmatpush1.msra.mxu0 %v1294
      %1296 = vmatprep.subr.mxu0 0.0
      %v1297 = vand.u32 %v382, 4294901760
      %v1298 = vsub.f32 %v382, %v1297
      %1299 = vmatpush1.msra.mxu0 %v1298
      %1300 = vmatprep.subr.mxu0 0.0
      %1301 = vmatpush2.msra.mxu0 0.0
      %1302 = vmatprep.subr.mxu0 0.0
      %1303 = vmatpush2.msra.mxu0 0.0
      %1304 = vmatprep.subr.mxu0 0.0
      %1305 = vmatpush2.msra.mxu0 0.0
      %1306 = vmatprep.subr.mxu0 0.0
      %1307 = vmatpush2.msra.mxu0 0.0
      %1308 = vmatprep.subr.mxu0 0.0
      %1309 = vmatpush2.msra.mxu0 0.0
      %1310 = vmatprep.subr.mxu0 0.0
      %1311 = vmatpush2.msra.mxu0 0.0
      %1312 = vmatprep.subr.mxu0 0.0
      %1313 = vmatpush2.msra.mxu0 0.0
      %1314 = vmatprep.subr.mxu0 0.0
      %1315 = vmatpush2.msra.mxu0 0.0
      %1316 = vmatprep.subr.mxu0 0.0
      %1317 = vmatpush2.msra.mxu0 0.0
      %1318 = vmatprep.subr.mxu0 0.0
      %1319 = vmatpush2.msra.mxu0 0.0
      %1320 = vmatprep.subr.mxu0 0.0
      %1321 = vmatpush2.msra.mxu0 0.0
      %1322 = vmatprep.subr.mxu0 0.0
      %1323 = vmatpush2.msra.mxu0 0.0
      %1324 = vmatprep.subr.mxu0 0.0
      %1325 = vmatpush2.msra.mxu0 0.0
      %1326 = vmatprep.subr.mxu0 0.0
      %1327 = vmatpush2.msra.mxu0 0.0
      %1328 = vmatprep.subr.mxu0 0.0
      %1329 = vmatpush2.msra.mxu0 0.0
      %1330 = vmatprep.subr.mxu0 0.0
      %1331 = vmatpush2.msra.mxu0 0.0
      %1332 = vmatprep.mubr.f32.mxu0 0.0
      %v1333 = vand.u32 %v395, 4294901760
      %v1334 = vsub.f32 %v395, %v1333
      %1335 = vmatmul.mubr.f32.gmra.mxu0 %v1334
      %v1336 = vpop.f32.mrf.mxu0
      %v1337 = vadd.f32 %v1237, %v1336
      %v1338 = vpop.f32.mrf.mxu0
      %1339 = vmatprep.mubr.f32.mxu0 0.0
      %v1340 = vand.u32 %v398, 4294901760
      %v1341 = vsub.f32 %v398, %v1340
      %1342 = vmatmul.mubr.f32.gmra.mxu0 %v1341
      %v1343 = vpop.f32.mrf.mxu0
      %v1344 = vadd.f32 %v1243, %v1343
      %v1345 = vpop.f32.mrf.mxu0
      %1346 = vmatprep.mubr.f32.mxu0 0.0
      %v1347 = vand.u32 %v401, 4294901760
      %v1348 = vsub.f32 %v401, %v1347
      %1349 = vmatmul.mubr.f32.gmra.mxu0 %v1348
      %v1350 = vpop.f32.mrf.mxu0
      %v1351 = vadd.f32 %v1249, %v1350
      %v1352 = vpop.f32.mrf.mxu0
      %1353 = vdwg.mxu0
      %1354 = vmatprep.subr.mxu0 0.0
      %1355 = vmatpush1.msra.mxu0 0.0
      %1356 = vmatprep.subr.mxu0 0.0
      %1357 = vmatpush1.msra.mxu0 0.0
      %1358 = vmatprep.subr.mxu0 0.0
      %1359 = vmatpush1.msra.mxu0 0.0
      %1360 = vmatprep.subr.mxu0 0.0
      %1361 = vmatpush1.msra.mxu0 0.0
      %1362 = vmatprep.subr.mxu0 0.0
      %1363 = vmatpush1.msra.mxu0 0.0
      %1364 = vmatprep.subr.mxu0 0.0
      %1365 = vmatpush1.msra.mxu0 0.0
      %1366 = vmatprep.subr.mxu0 0.0
      %1367 = vmatpush1.msra.mxu0 0.0
      %1368 = vmatprep.subr.mxu0 0.0
      %1369 = vmatpush1.msra.mxu0 0.0
      %1370 = vmatprep.subr.mxu0 0.0
      %v1371 = vand.u32 %v389, 4294901760
      %1372 = vmatpush1.msra.mxu0 %v1371
      %1373 = vmatprep.subr.mxu0 0.0
      %v1374 = vand.u32 %v388, 4294901760
      %1375 = vmatpush1.msra.mxu0 %v1374
      %1376 = vmatprep.subr.mxu0 0.0
      %v1377 = vand.u32 %v387, 4294901760
      %1378 = vmatpush1.msra.mxu0 %v1377
      %1379 = vmatprep.subr.mxu0 0.0
      %v1380 = vand.u32 %v386, 4294901760
      %1381 = vmatpush1.msra.mxu0 %v1380
      %1382 = vmatprep.subr.mxu0 0.0
      %v1383 = vand.u32 %v385, 4294901760
      %1384 = vmatpush1.msra.mxu0 %v1383
      %1385 = vmatprep.subr.mxu0 0.0
      %v1386 = vand.u32 %v384, 4294901760
      %1387 = vmatpush1.msra.mxu0 %v1386
      %1388 = vmatprep.subr.mxu0 0.0
      %v1389 = vand.u32 %v383, 4294901760
      %1390 = vmatpush1.msra.mxu0 %v1389
      %1391 = vmatprep.subr.mxu0 0.0
      %v1392 = vand.u32 %v382, 4294901760
      %1393 = vmatpush1.msra.mxu0 %v1392
      %1394 = vmatprep.subr.mxu0 0.0
      %1395 = vmatpush2.msra.mxu0 0.0
      %1396 = vmatprep.subr.mxu0 0.0
      %1397 = vmatpush2.msra.mxu0 0.0
      %1398 = vmatprep.subr.mxu0 0.0
      %1399 = vmatpush2.msra.mxu0 0.0
      %1400 = vmatprep.subr.mxu0 0.0
      %1401 = vmatpush2.msra.mxu0 0.0
      %1402 = vmatprep.subr.mxu0 0.0
      %1403 = vmatpush2.msra.mxu0 0.0
      %1404 = vmatprep.subr.mxu0 0.0
      %1405 = vmatpush2.msra.mxu0 0.0
      %1406 = vmatprep.subr.mxu0 0.0
      %1407 = vmatpush2.msra.mxu0 0.0
      %1408 = vmatprep.subr.mxu0 0.0
      %1409 = vmatpush2.msra.mxu0 0.0
      %1410 = vmatprep.subr.mxu0 0.0
      %1411 = vmatpush2.msra.mxu0 0.0
      %1412 = vmatprep.subr.mxu0 0.0
      %1413 = vmatpush2.msra.mxu0 0.0
      %1414 = vmatprep.subr.mxu0 0.0
      %1415 = vmatpush2.msra.mxu0 0.0
      %1416 = vmatprep.subr.mxu0 0.0
      %1417 = vmatpush2.msra.mxu0 0.0
      %1418 = vmatprep.subr.mxu0 0.0
      %1419 = vmatpush2.msra.mxu0 0.0
      %1420 = vmatprep.subr.mxu0 0.0
      %1421 = vmatpush2.msra.mxu0 0.0
      %1422 = vmatprep.subr.mxu0 0.0
      %1423 = vmatpush2.msra.mxu0 0.0
      %1424 = vmatprep.subr.mxu0 0.0
      %1425 = vmatpush2.msra.mxu0 0.0
      %1426 = vmatprep.mubr.f32.mxu0 0.0
      %v1427 = vand.u32 %v395, 4294901760
      %v1428 = vsub.f32 %v395, %v1427
      %v1429 = vand.u32 %v1428, 4294901760
      %1430 = vmatmul.mubr.f32.gmra.mxu0 %v1429
      %v1431 = vpop.f32.mrf.mxu0
      %v1432 = vadd.f32 %v1337, %v1431
      %v1433 = vpop.f32.mrf.mxu0
      %1434 = vmatprep.mubr.f32.mxu0 0.0
      %v1435 = vand.u32 %v398, 4294901760
      %v1436 = vsub.f32 %v398, %v1435
      %v1437 = vand.u32 %v1436, 4294901760
      %1438 = vmatmul.mubr.f32.gmra.mxu0 %v1437
      %v1439 = vpop.f32.mrf.mxu0
      %v1440 = vadd.f32 %v1344, %v1439
      %v1441 = vpop.f32.mrf.mxu0
      %1442 = vmatprep.mubr.f32.mxu0 0.0
      %v1443 = vand.u32 %v401, 4294901760
      %v1444 = vsub.f32 %v401, %v1443
      %v1445 = vand.u32 %v1444, 4294901760
      %1446 = vmatmul.mubr.f32.gmra.mxu0 %v1445
      %v1447 = vpop.f32.mrf.mxu0
      %v1448 = vadd.f32 %v1351, %v1447
      %v1449 = vpop.f32.mrf.mxu0
      %1450 = vdwg.mxu0
      %1451 = vmatprep.subr.mxu0 0.0
      %1452 = vmatpush1.msra.mxu0 0.0
      %1453 = vmatprep.subr.mxu0 0.0
      %1454 = vmatpush1.msra.mxu0 0.0
      %1455 = vmatprep.subr.mxu0 0.0
      %1456 = vmatpush1.msra.mxu0 0.0
      %1457 = vmatprep.subr.mxu0 0.0
      %1458 = vmatpush1.msra.mxu0 0.0
      %1459 = vmatprep.subr.mxu0 0.0
      %1460 = vmatpush1.msra.mxu0 0.0
      %1461 = vmatprep.subr.mxu0 0.0
      %1462 = vmatpush1.msra.mxu0 0.0
      %1463 = vmatprep.subr.mxu0 0.0
      %1464 = vmatpush1.msra.mxu0 0.0
      %1465 = vmatprep.subr.mxu0 0.0
      %1466 = vmatpush1.msra.mxu0 0.0
      %1467 = vmatprep.subr.mxu0 0.0
      %v1468 = vand.u32 %v389, 4294901760
      %v1469 = vsub.f32 %v389, %v1468
      %v1470 = vand.u32 %v1469, 4294901760
      %1471 = vmatpush1.msra.mxu0 %v1470
      %1472 = vmatprep.subr.mxu0 0.0
      %v1473 = vand.u32 %v388, 4294901760
      %v1474 = vsub.f32 %v388, %v1473
      %v1475 = vand.u32 %v1474, 4294901760
      %1476 = vmatpush1.msra.mxu0 %v1475
      %1477 = vmatprep.subr.mxu0 0.0
      %v1478 = vand.u32 %v387, 4294901760
      %v1479 = vsub.f32 %v387, %v1478
      %v1480 = vand.u32 %v1479, 4294901760
      %1481 = vmatpush1.msra.mxu0 %v1480
      %1482 = vmatprep.subr.mxu0 0.0
      %v1483 = vand.u32 %v386, 4294901760
      %v1484 = vsub.f32 %v386, %v1483
      %v1485 = vand.u32 %v1484, 4294901760
      %1486 = vmatpush1.msra.mxu0 %v1485
      %1487 = vmatprep.subr.mxu0 0.0
      %v1488 = vand.u32 %v385, 4294901760
      %v1489 = vsub.f32 %v385, %v1488
      %v1490 = vand.u32 %v1489, 4294901760
      %1491 = vmatpush1.msra.mxu0 %v1490
      %1492 = vmatprep.subr.mxu0 0.0
      %v1493 = vand.u32 %v384, 4294901760
      %v1494 = vsub.f32 %v384, %v1493
      %v1495 = vand.u32 %v1494, 4294901760
      %1496 = vmatpush1.msra.mxu0 %v1495
      %1497 = vmatprep.subr.mxu0 0.0
      %v1498 = vand.u32 %v383, 4294901760
      %v1499 = vsub.f32 %v383, %v1498
      %v1500 = vand.u32 %v1499, 4294901760
      %1501 = vmatpush1.msra.mxu0 %v1500
      %1502 = vmatprep.subr.mxu0 0.0
      %v1503 = vand.u32 %v382, 4294901760
      %v1504 = vsub.f32 %v382, %v1503
      %v1505 = vand.u32 %v1504, 4294901760
      %1506 = vmatpush1.msra.mxu0 %v1505
      %1507 = vmatprep.subr.mxu0 0.0
      %1508 = vmatpush2.msra.mxu0 0.0
      %1509 = vmatprep.subr.mxu0 0.0
      %1510 = vmatpush2.msra.mxu0 0.0
      %1511 = vmatprep.subr.mxu0 0.0
      %1512 = vmatpush2.msra.mxu0 0.0
      %1513 = vmatprep.subr.mxu0 0.0
      %1514 = vmatpush2.msra.mxu0 0.0
      %1515 = vmatprep.subr.mxu0 0.0
      %1516 = vmatpush2.msra.mxu0 0.0
      %1517 = vmatprep.subr.mxu0 0.0
      %1518 = vmatpush2.msra.mxu0 0.0
      %1519 = vmatprep.subr.mxu0 0.0
      %1520 = vmatpush2.msra.mxu0 0.0
      %1521 = vmatprep.subr.mxu0 0.0
      %1522 = vmatpush2.msra.mxu0 0.0
      %1523 = vmatprep.subr.mxu0 0.0
      %1524 = vmatpush2.msra.mxu0 0.0
      %1525 = vmatprep.subr.mxu0 0.0
      %1526 = vmatpush2.msra.mxu0 0.0
      %1527 = vmatprep.subr.mxu0 0.0
      %1528 = vmatpush2.msra.mxu0 0.0
      %1529 = vmatprep.subr.mxu0 0.0
      %1530 = vmatpush2.msra.mxu0 0.0
      %1531 = vmatprep.subr.mxu0 0.0
      %1532 = vmatpush2.msra.mxu0 0.0
      %1533 = vmatprep.subr.mxu0 0.0
      %1534 = vmatpush2.msra.mxu0 0.0
      %1535 = vmatprep.subr.mxu0 0.0
      %1536 = vmatpush2.msra.mxu0 0.0
      %1537 = vmatprep.subr.mxu0 0.0
      %1538 = vmatpush2.msra.mxu0 0.0
      %1539 = vmatprep.mubr.f32.mxu0 0.0
      %v1540 = vand.u32 %v395, 4294901760
      %1541 = vmatmul.mubr.f32.gmra.mxu0 %v1540
      %v1542 = vpop.f32.mrf.mxu0
      %v1543 = vadd.f32 %v1432, %v1542
      %v1544 = vpop.f32.mrf.mxu0
      %1545 = vmatprep.mubr.f32.mxu0 0.0
      %v1546 = vand.u32 %v398, 4294901760
      %1547 = vmatmul.mubr.f32.gmra.mxu0 %v1546
      %v1548 = vpop.f32.mrf.mxu0
      %v1549 = vadd.f32 %v1440, %v1548
      %v1550 = vpop.f32.mrf.mxu0
      %1551 = vmatprep.mubr.f32.mxu0 0.0
      %v1552 = vand.u32 %v401, 4294901760
      %1553 = vmatmul.mubr.f32.gmra.mxu0 %v1552
      %v1554 = vpop.f32.mrf.mxu0
      %v1555 = vadd.f32 %v1448, %v1554
      %v1556 = vpop.f32.mrf.mxu0
      %1557 = vdwg.mxu0
      %1558 = vmatprep.subr.mxu0 0.0
      %1559 = vmatpush1.msra.mxu0 0.0
      %1560 = vmatprep.subr.mxu0 0.0
      %1561 = vmatpush1.msra.mxu0 0.0
      %1562 = vmatprep.subr.mxu0 0.0
      %1563 = vmatpush1.msra.mxu0 0.0
      %1564 = vmatprep.subr.mxu0 0.0
      %1565 = vmatpush1.msra.mxu0 0.0
      %1566 = vmatprep.subr.mxu0 0.0
      %1567 = vmatpush1.msra.mxu0 0.0
      %1568 = vmatprep.subr.mxu0 0.0
      %1569 = vmatpush1.msra.mxu0 0.0
      %1570 = vmatprep.subr.mxu0 0.0
      %1571 = vmatpush1.msra.mxu0 0.0
      %1572 = vmatprep.subr.mxu0 0.0
      %1573 = vmatpush1.msra.mxu0 0.0
      %1574 = vmatprep.subr.mxu0 0.0
      %v1575 = vand.u32 %v389, 4294901760
      %1576 = vmatpush1.msra.mxu0 %v1575
      %1577 = vmatprep.subr.mxu0 0.0
      %v1578 = vand.u32 %v388, 4294901760
      %1579 = vmatpush1.msra.mxu0 %v1578
      %1580 = vmatprep.subr.mxu0 0.0
      %v1581 = vand.u32 %v387, 4294901760
      %1582 = vmatpush1.msra.mxu0 %v1581
      %1583 = vmatprep.subr.mxu0 0.0
      %v1584 = vand.u32 %v386, 4294901760
      %1585 = vmatpush1.msra.mxu0 %v1584
      %1586 = vmatprep.subr.mxu0 0.0
      %v1587 = vand.u32 %v385, 4294901760
      %1588 = vmatpush1.msra.mxu0 %v1587
      %1589 = vmatprep.subr.mxu0 0.0
      %v1590 = vand.u32 %v384, 4294901760
      %1591 = vmatpush1.msra.mxu0 %v1590
      %1592 = vmatprep.subr.mxu0 0.0
      %v1593 = vand.u32 %v383, 4294901760
      %1594 = vmatpush1.msra.mxu0 %v1593
      %1595 = vmatprep.subr.mxu0 0.0
      %v1596 = vand.u32 %v382, 4294901760
      %1597 = vmatpush1.msra.mxu0 %v1596
      %1598 = vmatprep.subr.mxu0 0.0
      %1599 = vmatpush2.msra.mxu0 0.0
      %1600 = vmatprep.subr.mxu0 0.0
      %1601 = vmatpush2.msra.mxu0 0.0
      %1602 = vmatprep.subr.mxu0 0.0
      %1603 = vmatpush2.msra.mxu0 0.0
      %1604 = vmatprep.subr.mxu0 0.0
      %1605 = vmatpush2.msra.mxu0 0.0
      %1606 = vmatprep.subr.mxu0 0.0
      %1607 = vmatpush2.msra.mxu0 0.0
      %1608 = vmatprep.subr.mxu0 0.0
      %1609 = vmatpush2.msra.mxu0 0.0
      %1610 = vmatprep.subr.mxu0 0.0
      %1611 = vmatpush2.msra.mxu0 0.0
      %1612 = vmatprep.subr.mxu0 0.0
      %1613 = vmatpush2.msra.mxu0 0.0
      %1614 = vmatprep.subr.mxu0 0.0
      %1615 = vmatpush2.msra.mxu0 0.0
      %1616 = vmatprep.subr.mxu0 0.0
      %1617 = vmatpush2.msra.mxu0 0.0
      %1618 = vmatprep.subr.mxu0 0.0
      %1619 = vmatpush2.msra.mxu0 0.0
      %1620 = vmatprep.subr.mxu0 0.0
      %1621 = vmatpush2.msra.mxu0 0.0
      %1622 = vmatprep.subr.mxu0 0.0
      %1623 = vmatpush2.msra.mxu0 0.0
      %1624 = vmatprep.subr.mxu0 0.0
      %1625 = vmatpush2.msra.mxu0 0.0
      %1626 = vmatprep.subr.mxu0 0.0
      %1627 = vmatpush2.msra.mxu0 0.0
      %1628 = vmatprep.subr.mxu0 0.0
      %1629 = vmatpush2.msra.mxu0 0.0
      %1630 = vmatprep.mubr.f32.mxu0 0.0
      %v1631 = vand.u32 %v395, 4294901760
      %1632 = vmatmul.mubr.f32.gmra.mxu0 %v1631
      %v1633 = vpop.f32.mrf.mxu0
      %v1634 = vadd.f32 %v1543, %v1633
      %v1635 = vpop.f32.mrf.mxu0
      %1636 = vmatprep.mubr.f32.mxu0 0.0
      %v1637 = vand.u32 %v398, 4294901760
      %1638 = vmatmul.mubr.f32.gmra.mxu0 %v1637
      %v1639 = vpop.f32.mrf.mxu0
      %v1640 = vadd.f32 %v1549, %v1639
      %v1641 = vpop.f32.mrf.mxu0
      %1642 = vmatprep.mubr.f32.mxu0 0.0
      %v1643 = vand.u32 %v401, 4294901760
      %1644 = vmatmul.mubr.f32.gmra.mxu0 %v1643
      %v1645 = vpop.f32.mrf.mxu0
      %v1646 = vadd.f32 %v1555, %v1645
      %v1647 = vpop.f32.mrf.mxu0
      %1648 = vdwg.mxu0
      %v1649 = vmul.f32 %v1011, %v1011
      %v1650 = vmul.f32 %v1017, %v1017
      %v1651 = vmul.f32 %v1023, %v1023
      %v1652 = vmul.f32 %v1634, %v1634
      %v1653 = vmul.f32 %v1640, %v1640
      %v1654 = vmul.f32 %v1646, %v1646
      %v1655 = vadd.f32 %v1649, %v1652
      %v1656 = vadd.f32 %v1650, %v1653
      %v1657 = vadd.f32 %v1651, %v1654
      %v1658 = vrsqrt.pop %v1655
      %v1659 = vmul.f32 %v1655, %v1658
      %vm1660 = vcmp.eq.f32.partialorder %v1655, inf
      %v1661 = vsel %vm1660, %v1655, %v1659
      %vm1662 = vcmp.eq.f32.partialorder %v1655, 0.0
      %v1663 = vand.u32 %v1655, 2147483648
      %v1664 = vsel %vm1662, %v1663, %v1661
      %v1665 = vrsqrt.pop %v1656
      %v1666 = vmul.f32 %v1656, %v1665
      %vm1667 = vcmp.eq.f32.partialorder %v1656, inf
      %v1668 = vsel %vm1667, %v1656, %v1666
      %vm1669 = vcmp.eq.f32.partialorder %v1656, 0.0
      %v1670 = vand.u32 %v1656, 2147483648
      %v1671 = vsel %vm1669, %v1670, %v1668
      %v1672 = vrsqrt.pop %v1657
      %v1673 = vmul.f32 %v1657, %v1672
      %vm1674 = vcmp.eq.f32.partialorder %v1657, inf
      %v1675 = vsel %vm1674, %v1657, %v1673
      %vm1676 = vcmp.eq.f32.partialorder %v1657, 0.0
      %v1677 = vand.u32 %v1657, 2147483648
      %v1678 = vsel %vm1676, %v1677, %v1675
      %1679 = vst [vmem:[%s283] sm:$0xff] %v1664
      %1680 = vst [vmem:[%s283 + $0x8] sm:$0xff] %v1671
      %1681 = vst [vmem:[%s283 + $0x10] sm:$0xff] %v1678
      %v1682 = vand.u32 2147483647, %v1011
      %v1683 = vand.u32 2147483647, %v1634
      %v1684 = vmin.f32 %v1682, %v1683
      %v1685 = vmax.f32 %v1682, %v1683
      %v1686 = vrcp.pop %v1685
      %v1687 = vmul.f32 %v1684, %v1686
      %v1688 = vmul.f32 %v1687, %v1687
      %v1689 = vmul.f32 0.002785687, %v1688
      %v1690 = vadd.f32 %v1689, -0.015866
      %v1691 = vmul.f32 %v1690, %v1688
      %v1692 = vadd.f32 %v1691, 0.04247222
      %v1693 = vmul.f32 %v1692, %v1688
      %v1694 = vadd.f32 %v1693, -0.074975304
      %v1695 = vmul.f32 %v1694, %v1688
      %v1696 = vadd.f32 %v1695, 0.1064488
      %v1697 = vmul.f32 %v1696, %v1688
      %v1698 = vadd.f32 %v1697, -0.14207031
      %v1699 = vmul.f32 %v1698, %v1688
      %v1700 = vadd.f32 %v1699, 0.19993454
      %v1701 = vmul.f32 %v1700, %v1688
      %v1702 = vadd.f32 %v1701, -0.33333147
      %v1703 = vmul.f32 %v1702, %v1688
      %v1704 = vmul.f32 %v1703, %v1687
      %v1705 = vadd.f32 %v1704, %v1687
      %vm1706 = vcmp.gt.f32.partialorder %v1683, %v1682
      %v1707 = vsub.f32 1.5707964, %v1705
      %v1708 = vsel %vm1706, %v1707, %v1705
      %vm1709 = vcmp.lt.f32.partialorder %v1011, 0.0
      %v1710 = vsub.f32 3.1415927, %v1708
      %v1711 = vsel %vm1709, %v1710, %v1708
      %vm1712 = vcmp.lt.s32.totalorder %v1011, 0
      %v1713 = vsel %vm1712, 3.1415927, 0.0
      %vm1714 = vcmp.eq.f32.partialorder %v1634, 0.0
      %v1715 = vsel %vm1714, %v1713, %v1711
      %vm1716 = vcmp.ne.f32.partialorder %v1011, %v1011
      %vm1717 = vcmp.ne.f32.partialorder %v1634, %v1634
      %vm1718 = vmor %vm1716, %vm1717
      %v1719 = vsel %vm1718, nan, %v1715
      %vm1720 = vcmp.lt.f32.partialorder %v1011, 0.0
      %v1721 = vsel %vm1720, 2.3561945, 0.7853982
      %vm1722 = vcmp.eq.s32.totalorder %v1682, inf
      %vm1723 = vcmp.eq.s32.totalorder %v1683, inf
      %vm1724 = vmand %vm1722, %vm1723
      %v1725 = vsel %vm1724, %v1721, %v1719
      %v1726 = vand.u32 2147483647, %v1725
      %v1727 = vand.u32 %v1634, 2147483648
      %v1728 = vor.u32 %v1726, %v1727
      %v1729 = vand.u32 2147483647, %v1017
      %v1730 = vand.u32 2147483647, %v1640
      %v1731 = vmin.f32 %v1729, %v1730
      %v1732 = vmax.f32 %v1729, %v1730
      %v1733 = vrcp.pop %v1732
      %v1734 = vmul.f32 %v1731, %v1733
      %v1735 = vmul.f32 %v1734, %v1734
      %v1736 = vmul.f32 0.002785687, %v1735
      %v1737 = vadd.f32 %v1736, -0.015866
      %v1738 = vmul.f32 %v1737, %v1735
      %v1739 = vadd.f32 %v1738, 0.04247222
      %v1740 = vmul.f32 %v1739, %v1735
      %v1741 = vadd.f32 %v1740, -0.074975304
      %v1742 = vmul.f32 %v1741, %v1735
      %v1743 = vadd.f32 %v1742, 0.1064488
      %v1744 = vmul.f32 %v1743, %v1735
      %v1745 = vadd.f32 %v1744, -0.14207031
      %v1746 = vmul.f32 %v1745, %v1735
      %v1747 = vadd.f32 %v1746, 0.19993454
      %v1748 = vmul.f32 %v1747, %v1735
      %v1749 = vadd.f32 %v1748, -0.33333147
      %v1750 = vmul.f32 %v1749, %v1735
      %v1751 = vmul.f32 %v1750, %v1734
      %v1752 = vadd.f32 %v1751, %v1734
      %vm1753 = vcmp.gt.f32.partialorder %v1730, %v1729
      %v1754 = vsub.f32 1.5707964, %v1752
      %v1755 = vsel %vm1753, %v1754, %v1752
      %vm1756 = vcmp.lt.f32.partialorder %v1017, 0.0
      %v1757 = vsub.f32 3.1415927, %v1755
      %v1758 = vsel %vm1756, %v1757, %v1755
      %vm1759 = vcmp.lt.s32.totalorder %v1017, 0
      %v1760 = vsel %vm1759, 3.1415927, 0.0
      %vm1761 = vcmp.eq.f32.partialorder %v1640, 0.0
      %v1762 = vsel %vm1761, %v1760, %v1758
      %vm1763 = vcmp.ne.f32.partialorder %v1017, %v1017
      %vm1764 = vcmp.ne.f32.partialorder %v1640, %v1640
      %vm1765 = vmor %vm1763, %vm1764
      %v1766 = vsel %vm1765, nan, %v1762
      %vm1767 = vcmp.lt.f32.partialorder %v1017, 0.0
      %v1768 = vsel %vm1767, 2.3561945, 0.7853982
      %vm1769 = vcmp.eq.s32.totalorder %v1729, inf
      %vm1770 = vcmp.eq.s32.totalorder %v1730, inf
      %vm1771 = vmand %vm1769, %vm1770
      %v1772 = vsel %vm1771, %v1768, %v1766
      %v1773 = vand.u32 2147483647, %v1772
      %v1774 = vand.u32 %v1640, 2147483648
      %v1775 = vor.u32 %v1773, %v1774
      %v1776 = vand.u32 2147483647, %v1023
      %v1777 = vand.u32 2147483647, %v1646
      %v1778 = vmin.f32 %v1776, %v1777
      %v1779 = vmax.f32 %v1776, %v1777
      %v1780 = vrcp.pop %v1779
      %v1781 = vmul.f32 %v1778, %v1780
      %v1782 = vmul.f32 %v1781, %v1781
      %v1783 = vmul.f32 0.002785687, %v1782
      %v1784 = vadd.f32 %v1783, -0.015866
      %v1785 = vmul.f32 %v1784, %v1782
      %v1786 = vadd.f32 %v1785, 0.04247222
      %v1787 = vmul.f32 %v1786, %v1782
      %v1788 = vadd.f32 %v1787, -0.074975304
      %v1789 = vmul.f32 %v1788, %v1782
      %v1790 = vadd.f32 %v1789, 0.1064488
      %v1791 = vmul.f32 %v1790, %v1782
      %v1792 = vadd.f32 %v1791, -0.14207031
      %v1793 = vmul.f32 %v1792, %v1782
      %v1794 = vadd.f32 %v1793, 0.19993454
      %v1795 = vmul.f32 %v1794, %v1782
      %v1796 = vadd.f32 %v1795, -0.33333147
      %v1797 = vmul.f32 %v1796, %v1782
      %v1798 = vmul.f32 %v1797, %v1781
      %v1799 = vadd.f32 %v1798, %v1781
      %vm1800 = vcmp.gt.f32.partialorder %v1777, %v1776
      %v1801 = vsub.f32 1.5707964, %v1799
      %v1802 = vsel %vm1800, %v1801, %v1799
      %vm1803 = vcmp.lt.f32.partialorder %v1023, 0.0
      %v1804 = vsub.f32 3.1415927, %v1802
      %v1805 = vsel %vm1803, %v1804, %v1802
      %vm1806 = vcmp.lt.s32.totalorder %v1023, 0
      %v1807 = vsel %vm1806, 3.1415927, 0.0
      %vm1808 = vcmp.eq.f32.partialorder %v1646, 0.0
      %v1809 = vsel %vm1808, %v1807, %v1805
      %vm1810 = vcmp.ne.f32.partialorder %v1023, %v1023
      %vm1811 = vcmp.ne.f32.partialorder %v1646, %v1646
      %vm1812 = vmor %vm1810, %vm1811
      %v1813 = vsel %vm1812, nan, %v1809
      %vm1814 = vcmp.lt.f32.partialorder %v1023, 0.0
      %v1815 = vsel %vm1814, 2.3561945, 0.7853982
      %vm1816 = vcmp.eq.s32.totalorder %v1776, inf
      %vm1817 = vcmp.eq.s32.totalorder %v1777, inf
      %vm1818 = vmand %vm1816, %vm1817
      %v1819 = vsel %vm1818, %v1815, %v1813
      %v1820 = vand.u32 2147483647, %v1819
      %v1821 = vand.u32 %v1646, 2147483648
      %v1822 = vor.u32 %v1820, %v1821
      %s1823 = scalar_lea.vmem %s283, 24
      %1824 = vst [vmem:[%s1823] sm:$0xff] %v1728
      %1825 = vst [vmem:[%s1823 + $0x8] sm:$0xff] %v1775
      %1826 = vst [vmem:[%s1823 + $0x10] sm:$0xff] %v1822
      %s1827 = smul.u32 3, %s20
      %p1828 = scmp.lt.s32.totalorder %s19, 1
      %s1829 = scalar_select %p1828, %s19, 1
      %p1830 = scmp.lt.s32.totalorder %s1827, 2
      %s1831 = scalar_select %p1830, %s1827, 2
      %p1832 = scmp.lt.s32.totalorder %s21, 0
      %s1833 = scalar_select %p1832, %s21, 0
      %s1834 = sadd.s32 %s1833, %s1831
      %s1835 = smul.addr %s1829, 6
      %s1836 = sadd.s32 %s1834, %s1835
      %s1837 = smul.addr %s1836, 8
      %s1838 = scalar_lea.vmem %s3, %s1837
      // Predicated region
      $region37: #{stft_pallas.1} parent=31 // pred_check
        %p1839 = pneg %p139
      $region38: #{stft_pallas.1} parent=31 // pred_check_branch
        %1841 = sbr.rel (%p1839) target = $region40
      $region39: #{stft_pallas.1} parent=31 // pred_region
        %s1842 = smul.u32 3, %s20
      $region40: #{stft_pallas.1} parent=31 // pred_fallthru
        _
    $region32: #{stft_pallas.1} parent=5 // pred_fallthru
      _
    %p1843 = scmp.le.s32.totalorder 2, %s9
    // Predicated region
    $region41: #{stft_pallas.1} parent=5 // pred_check
      %p1844 = pneg %p1843
    $region42: #{stft_pallas.1} parent=5 // pred_check_branch
      %1846 = sbr.rel (%p1844) target = $region44
    $region43: #{stft_pallas.1} parent=5 // pred_region
      %s1847 = ssub.s32 %s9, 2
      // Predicated region
      $region45: #{stft_pallas.1} parent=43 // pred_check
        %p1848 = pneg %p145
      $region46: #{stft_pallas.1} parent=43 // pred_check_branch
        %1850 = sbr.rel (%p1848) target = $region48
      $region47: #{stft_pallas.1} parent=43 // pred_region
        %s1851 = smul.u32 3, %s23
        %p1852 = scmp.lt.s32.totalorder %s22, 1
        %s1853 = scalar_select %p1852, %s22, 1
        %p1854 = scmp.lt.s32.totalorder %s1851, 2
        %s1855 = scalar_select %p1854, %s1851, 2
        %p1856 = scmp.lt.s32.totalorder %s24, 0
        %s1857 = scalar_select %p1856, %s24, 0
        %s1858 = sadd.s32 %s1857, %s1855
        %s1859 = smul.addr %s1853, 6
        %s1860 = sadd.s32 %s1858, %s1859
        %s1861 = smul.addr %s1860, 8
        %s1862 = scalar_lea.vmem %s3, %s1861
      $region48: #{stft_pallas.1} parent=43 // pred_fallthru
        _
    $region44: #{stft_pallas.1} parent=5 // pred_fallthru
      _
  $region6: #{stft_pallas.1} parent=0 // loop_footer
    %s13 = sadd.s32 1, %s9
  $region7: #{stft_pallas.1} parent=0 // loop_footer_branch
    %8 = sbr.rel target = $region3
  $region8: #{stft_pallas.1} parent=0 // loop_exit
    _

</llo_original>
